<compile_context>
chip_gen: v7x
topology: tpu7x:2x2x1
jax: 0.10.0
libtpu: 0.0.40
codegen_flags: <defaults>
</compile_context>

<pallas_src>
import jax
import jax.numpy as jnp
from jax import lax
from jax.experimental import pallas as pl
from jax.experimental.pallas import tpu as pltpu

LEAKY_SLOPE = 0.2
BN_EPS = 1e-5
_LANE = 128


def _round_up(x, m):
    return ((x + m - 1) // m) * m


def _choose_tile(batch, tb_request):
    """Batch tile: multiple of 128, >=2 grid steps when batch is large enough."""
    tb_request = max(_LANE, _round_up(tb_request, _LANE))
    if batch <= _LANE:
        return _LANE
    cap = _round_up((batch + 1) // 2, _LANE)   # guarantee >= 2 tiles (v7x 2 TCs)
    return min(tb_request, cap)


# --------------------------------------------------------------------------
# Pallas kernel: fused row-gather (one-hot MXU matmul) + fc1 -> LeakyReLU ->
# (BN1 folded) -> fc2 -> LeakyReLU -> (BN2 folded) -> fc3 as a (1, tb) row.
# Dropout(0.3) is identity in inference mode.
# TODO(synk): training-mode dropout / batch-statistic BatchNorm not implemented.
# --------------------------------------------------------------------------
def _syn_kernel(ida_ref, idb_ref, idc_ref, ta_ref, tb_ref, tc_ref,
                b1_ref, w2_ref, b2_ref, w3_ref, b3_ref, out_ref):
    tbk = out_ref.shape[1]
    cdt = ta_ref.dtype

    def gathered_fc1(id_ref, tab_ref):
        # Row gather as a one-hot matmul: (tb, n) x (n, C2p) on the MXU.
        n = tab_ref.shape[0]
        onehot = (lax.broadcasted_iota(jnp.int32, (tbk, n), 1)
                  == id_ref[...]).astype(cdt)
        return jnp.dot(onehot, tab_ref[...], preferred_element_type=jnp.float32)

    # fc1 (pre-baked into per-source tables) + bias, accumulated in f32.
    x = (gathered_fc1(ida_ref, ta_ref)
         + gathered_fc1(idb_ref, tb_ref)
         + gathered_fc1(idc_ref, tc_ref)
         + b1_ref[...])
    x = jnp.maximum(x, LEAKY_SLOPE * x)            # LeakyReLU(0.2)

    # BN1 + Dropout folded away; fc2 + LeakyReLU(0.2).
    x = jnp.dot(x.astype(w2_ref.dtype), w2_ref[...],
                preferred_element_type=jnp.float32) + b2_ref[...]
    x = jnp.maximum(x, LEAKY_SLOPE * x)

    # BN2 + Dropout folded away; fc3 as a single lane-dense (1, tb) row:
    # (1, C4p) @ (C4p, tb)  — A @ B^T orientation, transpose via idle XLU.
    y = jnp.dot(w3_ref[...], x.astype(w3_ref.dtype).T,
                preferred_element_type=jnp.float32)
    out_ref[...] = y + b3_ref[...]


# --------------------------------------------------------------------------
# Parameter prep: fold inference-mode BN into the following Linear, zero-pad
# C2 / C4 up to multiples of 128 (padding propagates as exact zeros through
# LeakyReLU / matmuls).  w1 / biases stay f32; w2 / w3 go to compute_dtype.
# --------------------------------------------------------------------------
def fold_params(params, compute_dtype=jnp.bfloat16):
    s1 = params["g1"] * lax.rsqrt(params["v1"] + BN_EPS)        # (1, C2)
    t1 = params["be1"] - params["m1"] * s1                      # (1, C2)
    w2 = params["w2"] * s1.reshape(-1, 1)                       # (C2, C4)
    b2 = t1 @ params["w2"] + params["b2"]                       # (1, C4)

    s2 = params["g2"] * lax.rsqrt(params["v2"] + BN_EPS)        # (1, C4)
    t2 = params["be2"] - params["m2"] * s2                      # (1, C4)
    w3 = params["w3"] * s2.reshape(-1, 1)                       # (C4, 1)
    b3 = t2 @ params["w3"] + params["b3"]                       # (1, 1)

    c_in, c2 = params["w1"].shape
    c4 = w3.shape[0]
    c2p = _round_up(c2, _LANE)
    c4p = _round_up(c4, _LANE)

    w1p = jnp.zeros((c_in, c2p), jnp.float32).at[:, :c2].set(params["w1"])
    b1p = jnp.zeros((1, c2p), jnp.float32).at[:, :c2].set(params["b1"])
    w2p = jnp.zeros((c2p, c4p), jnp.float32).at[:c2, :c4].set(w2)
    b2p = jnp.zeros((1, c4p), jnp.float32).at[:, :c4].set(b2)
    w3p = jnp.zeros((1, c4p), jnp.float32).at[0, :c4].set(w3[:, 0])

    return dict(
        compute_dtype=compute_dtype,
        w1=w1p,                               # f32: folded into gather tables per-forward
        b1=b1p,                               # f32
        w2=w2p.astype(compute_dtype),
        b2=b2p,                               # f32
        w3=w3p.astype(compute_dtype),         # fc3 as a (1, C4p) row
        b3=b3.astype(jnp.float32),            # (1, 1)
    )


# --------------------------------------------------------------------------
# Wrapper: per-forward table precompute (tiny), batch tiling, pallas_call.
# --------------------------------------------------------------------------
def syn_prediction_forward(graph_embed, druga_id, drugb_id, cellline_id,
                           drug, drug_num, folded, *, tb=512):
    cdt = folded["compute_dtype"]
    w1, b1 = folded["w1"], folded["b1"]
    w2, b2 = folded["w2"], folded["b2"]
    w3, b3 = folded["w3"], folded["b3"]

    # B-independent, KB-scale precompute: bake w1 into three per-source tables
    # so the kernel gathers fc1 outputs directly (h is never materialized).
    cat_embed = jnp.concatenate([drug, graph_embed[:drug_num]], axis=1)
    dc = cat_embed.shape[1]
    tab_a = cat_embed @ w1[:dc]               # (drug_num, C2p) f32
    tab_b = cat_embed @ w1[dc:2 * dc]         # (drug_num, C2p)
    tab_c = graph_embed @ w1[2 * dc:]         # (N, C2p)

    def _prep_table(t):
        r = _round_up(t.shape[0], 8)
        if r != t.shape[0]:
            t = jnp.pad(t, ((0, r - t.shape[0]), (0, 0)))
        return t.astype(cdt)

    tab_a, tab_b, tab_c = _prep_table(tab_a), _prep_table(tab_b), _prep_table(tab_c)

    batch = druga_id.shape[0]
    tbk = _choose_tile(batch, tb)
    b_pad = _round_up(batch, tbk)
    num_tiles = b_pad // tbk

    def _prep_ids(ids):
        ids = ids.astype(jnp.int32)
        if b_pad != batch:
            ids = jnp.pad(ids, (0, b_pad - batch))   # pad rows gather row 0, discarded
        return ids.reshape(b_pad, 1)

    ida, idb, idc = (_prep_ids(druga_id), _prep_ids(drugb_id),
                     _prep_ids(cellline_id))

    const_args = [tab_a, tab_b, tab_c, b1, w2, b2, w3, b3]
    # Constant index_map => Pallas re-uses the resident copy across grid steps.
    # TODO(synk): pipeline_mode=pl.Buffered(1) would also drop the unused
    # second buffer for these constants; left at default for compatibility.
    const_specs = [pl.BlockSpec(a.shape, lambda i: (0, 0)) for a in const_args]
    id_spec = pl.BlockSpec((tbk, 1), lambda i: (i, 0))

    out = pl.pallas_call(
        _syn_kernel,
        out_shape=jax.ShapeDtypeStruct((1, b_pad), jnp.float32),
        grid_spec=pltpu.PrefetchScalarGridSpec(
            num_scalar_prefetch=0,
            grid=(num_tiles,),
            in_specs=[id_spec, id_spec, id_spec] + const_specs,
            out_specs=pl.BlockSpec((1, tbk), lambda i: (0, i)),
        ),
        compiler_params=pltpu.CompilerParams(
            dimension_semantics=("parallel",),
            vmem_limit_bytes=32 * 1024 * 1024),
    )(ida, idb, idc, *const_args)
    return out[0, :batch]                      # == h.squeeze(dim=1)


# --------------------------------------------------------------------------
# Pure-JAX reference (unfolded params) + synthetic parameter init.
# --------------------------------------------------------------------------
def _reference_forward(graph_embed, druga_id, drugb_id, cellline_id,
                       drug, drug_num, params):
    cat_embed = jnp.concatenate([drug, graph_embed[:drug_num]], axis=1)
    h = jnp.concatenate(
        [cat_embed[druga_id, :], cat_embed[drugb_id, :], graph_embed[cellline_id, :]],
        axis=1)
    x = h @ params["w1"] + params["b1"]
    x = jnp.where(x >= 0, x, LEAKY_SLOPE * x)
    x = (x - params["m1"]) * lax.rsqrt(params["v1"] + BN_EPS) * params["g1"] + params["be1"]
    x = x @ params["w2"] + params["b2"]
    x = jnp.where(x >= 0, x, LEAKY_SLOPE * x)
    x = (x - params["m2"]) * lax.rsqrt(params["v2"] + BN_EPS) * params["g2"] + params["be2"]
    x = x @ params["w3"] + params["b3"]
    return x[:, 0]


def init_params(key, in_channels):
    c2 = in_channels // 2
    c4 = in_channels // 4
    ks = jax.random.split(key, 8)

    def lin(k, fan_in, fan_out):
        bound = 1.0 / jnp.sqrt(fan_in)
        kw, kb = jax.random.split(k)
        w = jax.random.uniform(kw, (fan_in, fan_out), jnp.float32, -bound, bound)
        b = jax.random.uniform(kb, (1, fan_out), jnp.float32, -bound, bound)
        return w, b

    w1, b1 = lin(ks[0], in_channels, c2)
    w2, b2 = lin(ks[1], c2, c4)
    w3, b3 = lin(ks[2], c4, 1)

    return dict(
        w1=w1, b1=b1,
        g1=1.0 + 0.1 * jax.random.normal(ks[3], (1, c2), jnp.float32),
        be1=0.1 * jax.random.normal(ks[4], (1, c2), jnp.float32),
        m1=0.05 * jax.random.normal(ks[5], (1, c2), jnp.float32),
        v1=1.0 + 0.1 * jax.random.uniform(ks[6], (1, c2), jnp.float32),
        w2=w2, b2=b2,
        g2=1.0 + 0.1 * jax.random.normal(ks[7], (1, c4), jnp.float32),
        be2=jnp.zeros((1, c4), jnp.float32),
        m2=jnp.zeros((1, c4), jnp.float32),
        v2=jnp.ones((1, c4), jnp.float32),
        w3=w3, b3=b3,
    )


if __name__ == "__main__":
    key = jax.random.PRNGKey(0)
    k_g, k_d, k_a, k_b, k_c, k_p = jax.random.split(key, 6)

    # Small synthetic shapes consistent with the module.  B deliberately not a
    # multiple of the tile to exercise tail handling.
    B = 20               # number of drug-pair samples
    drug_num = 8         # number of drugs (real model uses 87)
    n_cells = 4
    N = drug_num + n_cells
    d_graph = 64         # graph embedding dim
    d_drug = 32          # drug feature dim
    in_channels = 2 * (d_drug + d_graph) + d_graph   # = 256

    graph_embed = jax.random.normal(k_g, (N, d_graph), jnp.float32)
    drug = jax.random.normal(k_d, (drug_num, d_drug), jnp.float32)
    druga_id = jax.random.randint(k_a, (B,), 0, drug_num)
    drugb_id = jax.random.randint(k_b, (B,), 0, drug_num)
    cellline_id = jax.random.randint(k_c, (B,), drug_num, N)

    params = init_params(k_p, in_channels)
    ref = _reference_forward(graph_embed, druga_id, drugb_id, cellline_id,
                             drug, drug_num, params)

    # f32 compute path (tight tolerance).
    out_f32 = syn_prediction_forward(
        graph_embed, druga_id, drugb_id, cellline_id, drug, drug_num,
        fold_params(params, jnp.float32))
    out_f32 = jax.block_until_ready(out_f32)
    assert out_f32.shape == (B,)
    assert jnp.allclose(out_f32, ref, atol=1e-3, rtol=1e-3)

    # bf16 matmul-operand path (f32 accumulation) — default fast path on all gens.
    out_bf16 = syn_prediction_forward(
        graph_embed, druga_id, drugb_id, cellline_id, drug, drug_num,
        fold_params(params, jnp.bfloat16))
    out_bf16 = jax.block_until_ready(out_bf16)
    assert out_bf16.shape == (B,)
    assert jnp.allclose(out_bf16, ref, atol=1e-1, rtol=1e-1)

    print("KERNEL_OK")
</pallas_src>

<mosaic_0001>
module attributes {stable_mosaic.version = 11 : i64} {
  func.func @_syn_kernel(%arg0: i32, %arg1: memref<128x1xi32, #tpu.memory_space<vmem>>, %arg2: memref<128x1xi32, #tpu.memory_space<vmem>>, %arg3: memref<128x1xi32, #tpu.memory_space<vmem>>, %arg4: memref<8x128xf32, #tpu.memory_space<vmem>>, %arg5: memref<8x128xf32, #tpu.memory_space<vmem>>, %arg6: memref<16x128xf32, #tpu.memory_space<vmem>>, %arg7: memref<1x128xf32, #tpu.memory_space<vmem>>, %arg8: memref<128x128xf32, #tpu.memory_space<vmem>>, %arg9: memref<1x128xf32, #tpu.memory_space<vmem>>, %arg10: memref<1x128xf32, #tpu.memory_space<vmem>>, %arg11: memref<1x1xf32, #tpu.memory_space<vmem>>, %arg12: memref<1x128xf32, #tpu.memory_space<vmem>>) attributes {dimension_semantics = [#tpu.dimension_semantics<parallel>], iteration_bounds = array<i64: 1>, scalar_prefetch = 0 : i64, scratch_operands = 0 : i64, tpu.core_type = #tpu.core_type<tc>, window_params = [{transform_indices = @transform_0, window_bounds = array<i64: 128, 1>}, {transform_indices = @transform_1, window_bounds = array<i64: 128, 1>}, {transform_indices = @transform_2, window_bounds = array<i64: 128, 1>}, {pipeline_mode = #tpu.pipeline_mode<synchronous>, transform_indices = @transform_3, window_bounds = array<i64: 8, 128>}, {pipeline_mode = #tpu.pipeline_mode<synchronous>, transform_indices = @transform_4, window_bounds = array<i64: 8, 128>}, {pipeline_mode = #tpu.pipeline_mode<synchronous>, transform_indices = @transform_5, window_bounds = array<i64: 16, 128>}, {pipeline_mode = #tpu.pipeline_mode<synchronous>, transform_indices = @transform_6, window_bounds = array<i64: 1, 128>}, {pipeline_mode = #tpu.pipeline_mode<synchronous>, transform_indices = @transform_7, window_bounds = array<i64: 128, 128>}, {pipeline_mode = #tpu.pipeline_mode<synchronous>, transform_indices = @transform_8, window_bounds = array<i64: 1, 128>}, {pipeline_mode = #tpu.pipeline_mode<synchronous>, transform_indices = @transform_9, window_bounds = array<i64: 1, 128>}, {pipeline_mode = #tpu.pipeline_mode<synchronous>, transform_indices = @transform_10, window_bounds = array<i64: 1, 1>}, {transform_indices = @transform_11, window_bounds = array<i64: 1, 128>}]} {
    %0 = tpu.iota {dimensions = array<i32: 1>} : vector<128x8xi32>
    %c0 = arith.constant 0 : index
    %c0_0 = arith.constant 0 : index
    %1 = vector.load %arg1[%c0, %c0_0] : memref<128x1xi32, #tpu.memory_space<vmem>>, vector<128x1xi32>
    %2 = vector.broadcast %1 : vector<128x1xi32> to vector<128x8xi32>
    %3 = arith.cmpi eq, %0, %2 : vector<128x8xi32>
    %4 = arith.extui %3 : vector<128x8xi1> to vector<128x8xi32>
    %5 = arith.sitofp %4 : vector<128x8xi32> to vector<128x8xf32>
    %c0_1 = arith.constant 0 : index
    %c0_2 = arith.constant 0 : index
    %6 = vector.load %arg4[%c0_1, %c0_2] : memref<8x128xf32, #tpu.memory_space<vmem>>, vector<8x128xf32>
    %cst = arith.constant dense<0.000000e+00> : vector<128x128xf32>
    %7 = tpu.matmul %5, %6, %cst {dimension_numbers = #tpu.dot_dimension_numbers<[1], [0], [0], [1], [0, 0, 1, 1], [], []>} : vector<128x8xf32>, vector<8x128xf32>, vector<128x128xf32> -> vector<128x128xf32>
    %8 = tpu.iota {dimensions = array<i32: 1>} : vector<128x8xi32>
    %c0_3 = arith.constant 0 : index
    %c0_4 = arith.constant 0 : index
    %9 = vector.load %arg2[%c0_3, %c0_4] : memref<128x1xi32, #tpu.memory_space<vmem>>, vector<128x1xi32>
    %10 = vector.broadcast %9 : vector<128x1xi32> to vector<128x8xi32>
    %11 = arith.cmpi eq, %8, %10 : vector<128x8xi32>
    %12 = arith.extui %11 : vector<128x8xi1> to vector<128x8xi32>
    %13 = arith.sitofp %12 : vector<128x8xi32> to vector<128x8xf32>
    %c0_5 = arith.constant 0 : index
    %c0_6 = arith.constant 0 : index
    %14 = vector.load %arg5[%c0_5, %c0_6] : memref<8x128xf32, #tpu.memory_space<vmem>>, vector<8x128xf32>
    %cst_7 = arith.constant dense<0.000000e+00> : vector<128x128xf32>
    %15 = tpu.matmul %13, %14, %cst_7 {dimension_numbers = #tpu.dot_dimension_numbers<[1], [0], [0], [1], [0, 0, 1, 1], [], []>} : vector<128x8xf32>, vector<8x128xf32>, vector<128x128xf32> -> vector<128x128xf32>
    %16 = arith.addf %7, %15 : vector<128x128xf32>
    %17 = tpu.iota {dimensions = array<i32: 1>} : vector<128x16xi32>
    %c0_8 = arith.constant 0 : index
    %c0_9 = arith.constant 0 : index
    %18 = vector.load %arg3[%c0_8, %c0_9] : memref<128x1xi32, #tpu.memory_space<vmem>>, vector<128x1xi32>
    %19 = vector.broadcast %18 : vector<128x1xi32> to vector<128x16xi32>
    %20 = arith.cmpi eq, %17, %19 : vector<128x16xi32>
    %21 = arith.extui %20 : vector<128x16xi1> to vector<128x16xi32>
    %22 = arith.sitofp %21 : vector<128x16xi32> to vector<128x16xf32>
    %c0_10 = arith.constant 0 : index
    %c0_11 = arith.constant 0 : index
    %23 = vector.load %arg6[%c0_10, %c0_11] : memref<16x128xf32, #tpu.memory_space<vmem>>, vector<16x128xf32>
    %cst_12 = arith.constant dense<0.000000e+00> : vector<128x128xf32>
    %24 = tpu.matmul %22, %23, %cst_12 {dimension_numbers = #tpu.dot_dimension_numbers<[1], [0], [0], [1], [0, 0, 1, 1], [], []>} : vector<128x16xf32>, vector<16x128xf32>, vector<128x128xf32> -> vector<128x128xf32>
    %25 = arith.addf %16, %24 : vector<128x128xf32>
    %c0_13 = arith.constant 0 : index
    %c0_14 = arith.constant 0 : index
    %26 = vector.load %arg7[%c0_13, %c0_14] : memref<1x128xf32, #tpu.memory_space<vmem>>, vector<1x128xf32>
    %27 = vector.broadcast %26 : vector<1x128xf32> to vector<128x128xf32>
    %28 = arith.addf %25, %27 : vector<128x128xf32>
    %cst_15 = arith.constant 2.000000e-01 : f32
    %29 = vector.broadcast %cst_15 : f32 to vector<128x128xf32>
    %30 = arith.mulf %29, %28 : vector<128x128xf32>
    %31 = arith.maximumf %28, %30 : vector<128x128xf32>
    %c0_16 = arith.constant 0 : index
    %c0_17 = arith.constant 0 : index
    %32 = vector.load %arg8[%c0_16, %c0_17] : memref<128x128xf32, #tpu.memory_space<vmem>>, vector<128x128xf32>
    %cst_18 = arith.constant dense<0.000000e+00> : vector<128x128xf32>
    %33 = tpu.matmul %31, %32, %cst_18 {dimension_numbers = #tpu.dot_dimension_numbers<[1], [0], [0], [1], [0, 0, 1, 1], [], []>} : vector<128x128xf32>, vector<128x128xf32>, vector<128x128xf32> -> vector<128x128xf32>
    %c0_19 = arith.constant 0 : index
    %c0_20 = arith.constant 0 : index
    %34 = vector.load %arg9[%c0_19, %c0_20] : memref<1x128xf32, #tpu.memory_space<vmem>>, vector<1x128xf32>
    %35 = vector.broadcast %34 : vector<1x128xf32> to vector<128x128xf32>
    %36 = arith.addf %33, %35 : vector<128x128xf32>
    %cst_21 = arith.constant 2.000000e-01 : f32
    %37 = vector.broadcast %cst_21 : f32 to vector<128x128xf32>
    %38 = arith.mulf %37, %36 : vector<128x128xf32>
    %39 = arith.maximumf %36, %38 : vector<128x128xf32>
    %c0_22 = arith.constant 0 : index
    %c0_23 = arith.constant 0 : index
    %40 = vector.load %arg10[%c0_22, %c0_23] : memref<1x128xf32, #tpu.memory_space<vmem>>, vector<1x128xf32>
    %41 = tpu.transpose %39, [1, 0] : vector<128x128xf32> -> vector<128x128xf32>
    %cst_24 = arith.constant dense<0.000000e+00> : vector<1x128xf32>
    %42 = tpu.matmul %40, %41, %cst_24 {dimension_numbers = #tpu.dot_dimension_numbers<[1], [0], [0], [1], [0, 0, 1, 1], [], []>} : vector<1x128xf32>, vector<128x128xf32>, vector<1x128xf32> -> vector<1x128xf32>
    %c0_25 = arith.constant 0 : index
    %c0_26 = arith.constant 0 : index
    %43 = vector.load %arg11[%c0_25, %c0_26] : memref<1x1xf32, #tpu.memory_space<vmem>>, vector<1x1xf32>
    %44 = vector.broadcast %43 : vector<1x1xf32> to vector<1x128xf32>
    %45 = arith.addf %42, %44 : vector<1x128xf32>
    %c0_27 = arith.constant 0 : index
    %c0_28 = arith.constant 0 : index
    %46 = vector.load %arg12[%c0_27, %c0_28] : memref<1x128xf32, #tpu.memory_space<vmem>>, vector<1x128xf32>
    tpu.vector_store %arg12[%c0_27, %c0_28], %45 {strides = array<i32>} : memref<1x128xf32, #tpu.memory_space<vmem>>, vector<1x128xf32>,
    return
  }
  func.func @transform_0(%arg0: i32) -> (i32, i32) {
    %c0_i32 = arith.constant 0 : i32
    %c0_i32_0 = arith.constant 0 : i32
    return %arg0, %c0_i32 : i32, i32
  }
  func.func @transform_1(%arg0: i32) -> (i32, i32) {
    %c0_i32 = arith.constant 0 : i32
    %c0_i32_0 = arith.constant 0 : i32
    return %arg0, %c0_i32 : i32, i32
  }
  func.func @transform_2(%arg0: i32) -> (i32, i32) {
    %c0_i32 = arith.constant 0 : i32
    %c0_i32_0 = arith.constant 0 : i32
    return %arg0, %c0_i32 : i32, i32
  }
  func.func @transform_3(%arg0: i32) -> (i32, i32) {
    %c0_i32 = arith.constant 0 : i32
    %c0_i32_0 = arith.constant 0 : i32
    %c0_i32_1 = arith.constant 0 : i32
    return %c0_i32, %c0_i32_0 : i32, i32
  }
  func.func @transform_4(%arg0: i32) -> (i32, i32) {
    %c0_i32 = arith.constant 0 : i32
    %c0_i32_0 = arith.constant 0 : i32
    %c0_i32_1 = arith.constant 0 : i32
    return %c0_i32, %c0_i32_0 : i32, i32
  }
  func.func @transform_5(%arg0: i32) -> (i32, i32) {
    %c0_i32 = arith.constant 0 : i32
    %c0_i32_0 = arith.constant 0 : i32
    %c0_i32_1 = arith.constant 0 : i32
    return %c0_i32, %c0_i32_0 : i32, i32
  }
  func.func @transform_6(%arg0: i32) -> (i32, i32) {
    %c0_i32 = arith.constant 0 : i32
    %c0_i32_0 = arith.constant 0 : i32
    %c0_i32_1 = arith.constant 0 : i32
    return %c0_i32, %c0_i32_0 : i32, i32
  }
  func.func @transform_7(%arg0: i32) -> (i32, i32) {
    %c0_i32 = arith.constant 0 : i32
    %c0_i32_0 = arith.constant 0 : i32
    %c0_i32_1 = arith.constant 0 : i32
    return %c0_i32, %c0_i32_0 : i32, i32
  }
  func.func @transform_8(%arg0: i32) -> (i32, i32) {
    %c0_i32 = arith.constant 0 : i32
    %c0_i32_0 = arith.constant 0 : i32
    %c0_i32_1 = arith.constant 0 : i32
    return %c0_i32, %c0_i32_0 : i32, i32
  }
  func.func @transform_9(%arg0: i32) -> (i32, i32) {
    %c0_i32 = arith.constant 0 : i32
    %c0_i32_0 = arith.constant 0 : i32
    %c0_i32_1 = arith.constant 0 : i32
    return %c0_i32, %c0_i32_0 : i32, i32
  }
  func.func @transform_10(%arg0: i32) -> (i32, i32) {
    %c0_i32 = arith.constant 0 : i32
    %c0_i32_0 = arith.constant 0 : i32
    %c0_i32_1 = arith.constant 0 : i32
    return %c0_i32, %c0_i32_0 : i32, i32
  }
  func.func @transform_11(%arg0: i32) -> (i32, i32) {
    %c0_i32 = arith.constant 0 : i32
    %c0_i32_0 = arith.constant 0 : i32
    return %c0_i32, %arg0 : i32, i32
  }
}

</mosaic_0001>

<llo_original>
// kernel: tpu_custom_call.1
$region0: #{tpu_custom_call.1}
  #allocation0 [shape = 'u32[]', space=smem, size = 0x4, offset = 0x4, fixed_abs, tag = 'smem constant byte address 0x4 - core index']
  #allocation1 [shape = 'u32[144,128]{1,0:T(1,128)}', space=vmem, size = 0x12000, scoped, tag = 'internal scratch']
  #allocation2 [shape = 'f32[1,1]{1,0:T(1,128)S(1)}', space=vmem, size = 0x200, scoped, tag = 'scoped memory for tpu_custom_call.1']
  %s0 = inlined_call_operand.vmem [shape: s32[128,1], index: 0, kind: input, shape index: {}]
  %s1 = inlined_call_operand.vmem [shape: s32[128,1], index: 1, kind: input, shape index: {}]
  %s2 = inlined_call_operand.vmem [shape: s32[128,1], index: 2, kind: input, shape index: {}]
  %s3 = inlined_call_operand.vmem [shape: f32[8,128], index: 3, kind: input, shape index: {}]
  %s4 = inlined_call_operand.vmem [shape: f32[8,128], index: 4, kind: input, shape index: {}]
  %s5 = inlined_call_operand.vmem [shape: f32[16,128], index: 5, kind: input, shape index: {}]
  %s6 = inlined_call_operand.vmem [shape: f32[1,128], index: 6, kind: input, shape index: {}]
  %s7 = inlined_call_operand.vmem [shape: f32[128,128], index: 7, kind: input, shape index: {}]
  %s8 = inlined_call_operand.vmem [shape: f32[1,128], index: 8, kind: input, shape index: {}]
  %s9 = inlined_call_operand.vmem [shape: f32[1,128], index: 9, kind: input, shape index: {}]
  %s10 = inlined_call_operand.<no memory space> [shape: f32[1,1], index: 10, kind: input, shape index: {}]
  %s11 = inlined_call_operand.hbm [shape: f32[1,128], index: 11, kind: output, shape index: {}]
  %s12 = sld [smem:[#allocation0]]
  $region54: #{tpu_custom_call.1} parent=0
    _
  %s14 = ssub.s32 1, %s12
  %s15 = scalar_select 0, %s14, %s12
  %v16 = vstv %s10
  %17 = vst [vmem:[#allocation2] sm:$0x1] %v16
  $region1: #{tpu_custom_call.1} parent=0
    #allocation3 [shape = 'u8[512]{0}', space=vmem, size = 0x400, scoped, tag = 'output window, operand 0, single buffered']
    #allocation4 [shape = 's32[1]{0}', space=sflag, size = 0x4, scoped, tag = 'scoped memory for tpu_custom_call.1']
    %18 = vsyncpa [#allocation4], 0
    // Predicated region
    $region2: #{tpu_custom_call.1} parent=1 // pred_check
      _
    $region3: #{tpu_custom_call.1} parent=1 // pred_check_branch
      %20 = sbr.rel (0) target = $region5
    $region4: #{tpu_custom_call.1} parent=1 // pred_region
      _
    $region5: #{tpu_custom_call.1} parent=1 // pred_fallthru
      _
    // Predicated region
    $region6: #{tpu_custom_call.1} parent=1 // pred_check
      _
    $region7: #{tpu_custom_call.1} parent=1 // pred_check_branch
      %22 = sbr.rel (0) target = $region9
    $region8: #{tpu_custom_call.1} parent=1 // pred_region
      _
    $region9: #{tpu_custom_call.1} parent=1 // pred_fallthru
      _
    // Predicated region
    $region10: #{tpu_custom_call.1} parent=1 // pred_check
      _
    $region11: #{tpu_custom_call.1} parent=1 // pred_check_branch
      %24 = sbr.rel (0) target = $region13
    $region12: #{tpu_custom_call.1} parent=1 // pred_region
      _
    $region13: #{tpu_custom_call.1} parent=1 // pred_fallthru
      _
    // Predicated region
    $region14: #{tpu_custom_call.1} parent=1 // pred_check
      _
    $region15: #{tpu_custom_call.1} parent=1 // pred_check_branch
      %26 = sbr.rel (0) target = $region17
    $region16: #{tpu_custom_call.1} parent=1 // pred_region
      _
    $region17: #{tpu_custom_call.1} parent=1 // pred_fallthru
      _
    // Predicated region
    $region18: #{tpu_custom_call.1} parent=1 // pred_check
      _
    $region19: #{tpu_custom_call.1} parent=1 // pred_check_branch
      %28 = sbr.rel (0) target = $region21
    $region20: #{tpu_custom_call.1} parent=1 // pred_region
      _
    $region21: #{tpu_custom_call.1} parent=1 // pred_fallthru
      _
    // Predicated region
    $region22: #{tpu_custom_call.1} parent=1 // pred_check
      _
    $region23: #{tpu_custom_call.1} parent=1 // pred_check_branch
      %30 = sbr.rel (0) target = $region25
    $region24: #{tpu_custom_call.1} parent=1 // pred_region
      _
    $region25: #{tpu_custom_call.1} parent=1 // pred_fallthru
      _
    // Predicated region
    $region26: #{tpu_custom_call.1} parent=1 // pred_check
      _
    $region27: #{tpu_custom_call.1} parent=1 // pred_check_branch
      %32 = sbr.rel (0) target = $region29
    $region28: #{tpu_custom_call.1} parent=1 // pred_region
      _
    $region29: #{tpu_custom_call.1} parent=1 // pred_fallthru
      _
    // Predicated region
    $region30: #{tpu_custom_call.1} parent=1 // pred_check
      _
    $region31: #{tpu_custom_call.1} parent=1 // pred_check_branch
      %34 = sbr.rel (0) target = $region33
    $region32: #{tpu_custom_call.1} parent=1 // pred_region
      _
    $region33: #{tpu_custom_call.1} parent=1 // pred_fallthru
      _
    // Predicated region
    $region34: #{tpu_custom_call.1} parent=1 // pred_check
      _
    $region35: #{tpu_custom_call.1} parent=1 // pred_check_branch
      %36 = sbr.rel (0) target = $region37
    $region36: #{tpu_custom_call.1} parent=1 // pred_region
      _
    $region37: #{tpu_custom_call.1} parent=1 // pred_fallthru
      _
    // Predicated region
    $region38: #{tpu_custom_call.1} parent=1 // pred_check
      _
    $region39: #{tpu_custom_call.1} parent=1 // pred_check_branch
      %38 = sbr.rel (0) target = $region41
    $region40: #{tpu_custom_call.1} parent=1 // pred_region
      _
    $region41: #{tpu_custom_call.1} parent=1 // pred_fallthru
      _
    // Predicated region
    $region42: #{tpu_custom_call.1} parent=1 // pred_check
      _
    $region43: #{tpu_custom_call.1} parent=1 // pred_check_branch
      %40 = sbr.rel (0) target = $region45
    $region44: #{tpu_custom_call.1} parent=1 // pred_region
      _
    $region45: #{tpu_custom_call.1} parent=1 // pred_fallthru
      _
    %v41 = vlaneseq
    %v42 = vand.u32 %v41, 127
    %v43 = vld [vmem:[%s0] sm:$0xff]
    %v44 = vld [vmem:[%s0 + $0x8] sm:$0xff]
    %v45 = vld [vmem:[%s0 + $0x10] sm:$0xff]
    %v46 = vld [vmem:[%s0 + $0x18] sm:$0xff]
    %v47 = vld [vmem:[%s0 + $0x20] sm:$0xff]
    %v48 = vld [vmem:[%s0 + $0x28] sm:$0xff]
    %v49 = vld [vmem:[%s0 + $0x30] sm:$0xff]
    %v50 = vld [vmem:[%s0 + $0x38] sm:$0xff]
    %v51 = vld [vmem:[%s0 + $0x40] sm:$0xff]
    %v52 = vld [vmem:[%s0 + $0x48] sm:$0xff]
    %v53 = vld [vmem:[%s0 + $0x50] sm:$0xff]
    %v54 = vld [vmem:[%s0 + $0x58] sm:$0xff]
    %v55 = vld [vmem:[%s0 + $0x60] sm:$0xff]
    %v56 = vld [vmem:[%s0 + $0x68] sm:$0xff]
    %v57 = vld [vmem:[%s0 + $0x70] sm:$0xff]
    %v58 = vld [vmem:[%s0 + $0x78] sm:$0xff]
    %59 = vset.pattern.permute.xlu0 0
    %60 = vperm.xlu0 %59, %v43
    %v61 = vpop.permute.xlu0 %60
    %62 = vset.pattern.permute.xlu0 0
    %63 = vperm.xlu0 %62, %v44
    %v64 = vpop.permute.xlu0 %63
    %65 = vset.pattern.permute.xlu0 0
    %66 = vperm.xlu0 %65, %v45
    %v67 = vpop.permute.xlu0 %66
    %68 = vset.pattern.permute.xlu0 0
    %69 = vperm.xlu0 %68, %v46
    %v70 = vpop.permute.xlu0 %69
    %71 = vset.pattern.permute.xlu0 0
    %72 = vperm.xlu0 %71, %v47
    %v73 = vpop.permute.xlu0 %72
    %74 = vset.pattern.permute.xlu0 0
    %75 = vperm.xlu0 %74, %v48
    %v76 = vpop.permute.xlu0 %75
    %77 = vset.pattern.permute.xlu0 0
    %78 = vperm.xlu0 %77, %v49
    %v79 = vpop.permute.xlu0 %78
    %80 = vset.pattern.permute.xlu0 0
    %81 = vperm.xlu0 %80, %v50
    %v82 = vpop.permute.xlu0 %81
    %83 = vset.pattern.permute.xlu0 0
    %84 = vperm.xlu0 %83, %v51
    %v85 = vpop.permute.xlu0 %84
    %86 = vset.pattern.permute.xlu0 0
    %87 = vperm.xlu0 %86, %v52
    %v88 = vpop.permute.xlu0 %87
    %89 = vset.pattern.permute.xlu0 0
    %90 = vperm.xlu0 %89, %v53
    %v91 = vpop.permute.xlu0 %90
    %92 = vset.pattern.permute.xlu0 0
    %93 = vperm.xlu0 %92, %v54
    %v94 = vpop.permute.xlu0 %93
    %95 = vset.pattern.permute.xlu0 0
    %96 = vperm.xlu0 %95, %v55
    %v97 = vpop.permute.xlu0 %96
    %98 = vset.pattern.permute.xlu0 0
    %99 = vperm.xlu0 %98, %v56
    %v100 = vpop.permute.xlu0 %99
    %101 = vset.pattern.permute.xlu0 0
    %102 = vperm.xlu0 %101, %v57
    %v103 = vpop.permute.xlu0 %102
    %104 = vset.pattern.permute.xlu0 0
    %105 = vperm.xlu0 %104, %v58
    %v106 = vpop.permute.xlu0 %105
    %vm107 = vcmp.eq.s32.totalorder %v42, %v61
    %vm108 = vcmp.eq.s32.totalorder %v42, %v64
    %vm109 = vcmp.eq.s32.totalorder %v42, %v67
    %vm110 = vcmp.eq.s32.totalorder %v42, %v70
    %vm111 = vcmp.eq.s32.totalorder %v42, %v73
    %vm112 = vcmp.eq.s32.totalorder %v42, %v76
    %vm113 = vcmp.eq.s32.totalorder %v42, %v79
    %vm114 = vcmp.eq.s32.totalorder %v42, %v82
    %vm115 = vcmp.eq.s32.totalorder %v42, %v85
    %vm116 = vcmp.eq.s32.totalorder %v42, %v88
    %vm117 = vcmp.eq.s32.totalorder %v42, %v91
    %vm118 = vcmp.eq.s32.totalorder %v42, %v94
    %vm119 = vcmp.eq.s32.totalorder %v42, %v97
    %vm120 = vcmp.eq.s32.totalorder %v42, %v100
    %vm121 = vcmp.eq.s32.totalorder %v42, %v103
    %vm122 = vcmp.eq.s32.totalorder %v42, %v106
    %v123 = vsel %vm107, 1, 0
    %v124 = vsel %vm108, 1, 0
    %v125 = vsel %vm109, 1, 0
    %v126 = vsel %vm110, 1, 0
    %v127 = vsel %vm111, 1, 0
    %v128 = vsel %vm112, 1, 0
    %v129 = vsel %vm113, 1, 0
    %v130 = vsel %vm114, 1, 0
    %v131 = vsel %vm115, 1, 0
    %v132 = vsel %vm116, 1, 0
    %v133 = vsel %vm117, 1, 0
    %v134 = vsel %vm118, 1, 0
    %v135 = vsel %vm119, 1, 0
    %v136 = vsel %vm120, 1, 0
    %v137 = vsel %vm121, 1, 0
    %v138 = vsel %vm122, 1, 0
    %v139 = vcvt.s32.f32 %v123
    %v140 = vcvt.s32.f32 %v124
    %v141 = vcvt.s32.f32 %v125
    %v142 = vcvt.s32.f32 %v126
    %v143 = vcvt.s32.f32 %v127
    %v144 = vcvt.s32.f32 %v128
    %v145 = vcvt.s32.f32 %v129
    %v146 = vcvt.s32.f32 %v130
    %v147 = vcvt.s32.f32 %v131
    %v148 = vcvt.s32.f32 %v132
    %v149 = vcvt.s32.f32 %v133
    %v150 = vcvt.s32.f32 %v134
    %v151 = vcvt.s32.f32 %v135
    %v152 = vcvt.s32.f32 %v136
    %v153 = vcvt.s32.f32 %v137
    %v154 = vcvt.s32.f32 %v138
    %v155 = vld [vmem:[%s3] sm:$0xff]
    %v156 = vld [vmem:[%s1] sm:$0xff]
    %v157 = vld [vmem:[%s1 + $0x8] sm:$0xff]
    %v158 = vld [vmem:[%s1 + $0x10] sm:$0xff]
    %v159 = vld [vmem:[%s1 + $0x18] sm:$0xff]
    %v160 = vld [vmem:[%s1 + $0x20] sm:$0xff]
    %v161 = vld [vmem:[%s1 + $0x28] sm:$0xff]
    %v162 = vld [vmem:[%s1 + $0x30] sm:$0xff]
    %v163 = vld [vmem:[%s1 + $0x38] sm:$0xff]
    %v164 = vld [vmem:[%s1 + $0x40] sm:$0xff]
    %v165 = vld [vmem:[%s1 + $0x48] sm:$0xff]
    %v166 = vld [vmem:[%s1 + $0x50] sm:$0xff]
    %v167 = vld [vmem:[%s1 + $0x58] sm:$0xff]
    %v168 = vld [vmem:[%s1 + $0x60] sm:$0xff]
    %v169 = vld [vmem:[%s1 + $0x68] sm:$0xff]
    %v170 = vld [vmem:[%s1 + $0x70] sm:$0xff]
    %v171 = vld [vmem:[%s1 + $0x78] sm:$0xff]
    %172 = vset.pattern.permute.xlu0 0
    %173 = vperm.xlu0 %172, %v156
    %v174 = vpop.permute.xlu0 %173
    %175 = vset.pattern.permute.xlu0 0
    %176 = vperm.xlu0 %175, %v157
    %v177 = vpop.permute.xlu0 %176
    %178 = vset.pattern.permute.xlu0 0
    %179 = vperm.xlu0 %178, %v158
    %v180 = vpop.permute.xlu0 %179
    %181 = vset.pattern.permute.xlu0 0
    %182 = vperm.xlu0 %181, %v159
    %v183 = vpop.permute.xlu0 %182
    %184 = vset.pattern.permute.xlu0 0
    %185 = vperm.xlu0 %184, %v160
    %v186 = vpop.permute.xlu0 %185
    %187 = vset.pattern.permute.xlu0 0
    %188 = vperm.xlu0 %187, %v161
    %v189 = vpop.permute.xlu0 %188
    %190 = vset.pattern.permute.xlu0 0
    %191 = vperm.xlu0 %190, %v162
    %v192 = vpop.permute.xlu0 %191
    %193 = vset.pattern.permute.xlu0 0
    %194 = vperm.xlu0 %193, %v163
    %v195 = vpop.permute.xlu0 %194
    %196 = vset.pattern.permute.xlu0 0
    %197 = vperm.xlu0 %196, %v164
    %v198 = vpop.permute.xlu0 %197
    %199 = vset.pattern.permute.xlu0 0
    %200 = vperm.xlu0 %199, %v165
    %v201 = vpop.permute.xlu0 %200
    %202 = vset.pattern.permute.xlu0 0
    %203 = vperm.xlu0 %202, %v166
    %v204 = vpop.permute.xlu0 %203
    %205 = vset.pattern.permute.xlu0 0
    %206 = vperm.xlu0 %205, %v167
    %v207 = vpop.permute.xlu0 %206
    %208 = vset.pattern.permute.xlu0 0
    %209 = vperm.xlu0 %208, %v168
    %v210 = vpop.permute.xlu0 %209
    %211 = vset.pattern.permute.xlu0 0
    %212 = vperm.xlu0 %211, %v169
    %v213 = vpop.permute.xlu0 %212
    %214 = vset.pattern.permute.xlu0 0
    %215 = vperm.xlu0 %214, %v170
    %v216 = vpop.permute.xlu0 %215
    %217 = vset.pattern.permute.xlu0 0
    %218 = vperm.xlu0 %217, %v171
    %v219 = vpop.permute.xlu0 %218
    %vm220 = vcmp.eq.s32.totalorder %v42, %v174
    %vm221 = vcmp.eq.s32.totalorder %v42, %v177
    %vm222 = vcmp.eq.s32.totalorder %v42, %v180
    %vm223 = vcmp.eq.s32.totalorder %v42, %v183
    %vm224 = vcmp.eq.s32.totalorder %v42, %v186
    %vm225 = vcmp.eq.s32.totalorder %v42, %v189
    %vm226 = vcmp.eq.s32.totalorder %v42, %v192
    %vm227 = vcmp.eq.s32.totalorder %v42, %v195
    %vm228 = vcmp.eq.s32.totalorder %v42, %v198
    %vm229 = vcmp.eq.s32.totalorder %v42, %v201
    %vm230 = vcmp.eq.s32.totalorder %v42, %v204
    %vm231 = vcmp.eq.s32.totalorder %v42, %v207
    %vm232 = vcmp.eq.s32.totalorder %v42, %v210
    %vm233 = vcmp.eq.s32.totalorder %v42, %v213
    %vm234 = vcmp.eq.s32.totalorder %v42, %v216
    %vm235 = vcmp.eq.s32.totalorder %v42, %v219
    %v236 = vsel %vm220, 1, 0
    %v237 = vsel %vm221, 1, 0
    %v238 = vsel %vm222, 1, 0
    %v239 = vsel %vm223, 1, 0
    %v240 = vsel %vm224, 1, 0
    %v241 = vsel %vm225, 1, 0
    %v242 = vsel %vm226, 1, 0
    %v243 = vsel %vm227, 1, 0
    %v244 = vsel %vm228, 1, 0
    %v245 = vsel %vm229, 1, 0
    %v246 = vsel %vm230, 1, 0
    %v247 = vsel %vm231, 1, 0
    %v248 = vsel %vm232, 1, 0
    %v249 = vsel %vm233, 1, 0
    %v250 = vsel %vm234, 1, 0
    %v251 = vsel %vm235, 1, 0
    %v252 = vcvt.s32.f32 %v236
    %v253 = vcvt.s32.f32 %v237
    %v254 = vcvt.s32.f32 %v238
    %v255 = vcvt.s32.f32 %v239
    %v256 = vcvt.s32.f32 %v240
    %v257 = vcvt.s32.f32 %v241
    %v258 = vcvt.s32.f32 %v242
    %v259 = vcvt.s32.f32 %v243
    %v260 = vcvt.s32.f32 %v244
    %v261 = vcvt.s32.f32 %v245
    %v262 = vcvt.s32.f32 %v246
    %v263 = vcvt.s32.f32 %v247
    %v264 = vcvt.s32.f32 %v248
    %v265 = vcvt.s32.f32 %v249
    %v266 = vcvt.s32.f32 %v250
    %v267 = vcvt.s32.f32 %v251
    %v268 = vld [vmem:[%s4] sm:$0xff]
    %vm269 = vcmask 64512
    %v271 = vsel %vm269, %v252, 0
    %v274 = vsel %vm269, %v253, 0
    %v277 = vsel %vm269, %v254, 0
    %v280 = vsel %vm269, %v255, 0
    %v283 = vsel %vm269, %v256, 0
    %v286 = vsel %vm269, %v257, 0
    %v289 = vsel %vm269, %v258, 0
    %v292 = vsel %vm269, %v259, 0
    %v295 = vsel %vm269, %v260, 0
    %v298 = vsel %vm269, %v261, 0
    %v301 = vsel %vm269, %v262, 0
    %v304 = vsel %vm269, %v263, 0
    %v307 = vsel %vm269, %v264, 0
    %v310 = vsel %vm269, %v265, 0
    %v313 = vsel %vm269, %v266, 0
    %v316 = vsel %vm269, %v267, 0
    %318 = vmatprep.subr.mxu0 0.0
    %319 = vmatpush1.msra.mxu0 %v268
    %320 = vmatprep.subr.mxu0 0.0
    %321 = vmatpush1.msra.mxu0 0.0
    %322 = vmatprep.subr.mxu0 0.0
    %323 = vmatpush1.msra.mxu0 0.0
    %324 = vmatprep.subr.mxu0 0.0
    %325 = vmatpush1.msra.mxu0 0.0
    %326 = vmatprep.subr.mxu0 0.0
    %327 = vmatpush1.msra.mxu0 0.0
    %328 = vmatprep.subr.mxu0 0.0
    %329 = vmatpush1.msra.mxu0 0.0
    %330 = vmatprep.subr.mxu0 0.0
    %331 = vmatpush1.msra.mxu0 0.0
    %332 = vmatprep.subr.mxu0 0.0
    %333 = vmatpush1.msra.mxu0 0.0
    %334 = vmatprep.subr.mxu0 0.0
    %335 = vmatpush1.msra.mxu0 0.0
    %336 = vmatprep.subr.mxu0 0.0
    %337 = vmatpush1.msra.mxu0 0.0
    %338 = vmatprep.subr.mxu0 0.0
    %339 = vmatpush1.msra.mxu0 0.0
    %340 = vmatprep.subr.mxu0 0.0
    %341 = vmatpush1.msra.mxu0 0.0
    %342 = vmatprep.subr.mxu0 0.0
    %343 = vmatpush1.msra.mxu0 0.0
    %344 = vmatprep.subr.mxu0 0.0
    %345 = vmatpush1.msra.mxu0 0.0
    %346 = vmatprep.subr.mxu0 0.0
    %347 = vmatpush1.msra.mxu0 0.0
    %348 = vmatprep.subr.mxu0 0.0
    %349 = vmatpush1.msra.mxu0 0.0
    %350 = vmatprep.subr.mxu0 0.0
    %351 = vmatpush1.msra.mxu0 0.0
    %352 = vmatprep.subr.mxu0 0.0
    %353 = vmatpush1.msra.mxu0 0.0
    %354 = vmatprep.subr.mxu0 0.0
    %355 = vmatpush1.msra.mxu0 0.0
    %356 = vmatprep.subr.mxu0 0.0
    %357 = vmatpush1.msra.mxu0 0.0
    %358 = vmatprep.subr.mxu0 0.0
    %359 = vmatpush1.msra.mxu0 0.0
    %360 = vmatprep.subr.mxu0 0.0
    %361 = vmatpush1.msra.mxu0 0.0
    %362 = vmatprep.subr.mxu0 0.0
    %363 = vmatpush1.msra.mxu0 0.0
    %364 = vmatprep.subr.mxu0 0.0
    %365 = vmatpush1.msra.mxu0 0.0
    %366 = vmatprep.subr.mxu0 0.0
    %367 = vmatpush1.msra.mxu0 0.0
    %368 = vmatprep.subr.mxu0 0.0
    %369 = vmatpush1.msra.mxu0 0.0
    %370 = vmatprep.subr.mxu0 0.0
    %371 = vmatpush1.msra.mxu0 0.0
    %372 = vmatprep.subr.mxu0 0.0
    %373 = vmatpush1.msra.mxu0 0.0
    %374 = vmatprep.subr.mxu0 0.0
    %375 = vmatpush1.msra.mxu0 0.0
    %376 = vmatprep.subr.mxu0 0.0
    %377 = vmatpush1.msra.mxu0 0.0
    %378 = vmatprep.subr.mxu0 0.0
    %379 = vmatpush1.msra.mxu0 0.0
    %380 = vmatprep.subr.mxu0 0.0
    %381 = vmatpush1.msra.mxu0 0.0
    %382 = vmatprep.mubr.f32.mxu0 0.0
    %383 = vmatmul.mubr.f32.gmra.mrb[0].mxu0 %v271
    %v384 = vpop.f32.mrb[0].mxu0
    %v385 = vadd.f32 0.0, %v384
    %v386 = vpop.f32.mrb[0].mxu0
    %387 = vmatprep.mubr.f32.mxu0 0.0
    %388 = vmatmul.mubr.f32.gmra.mrb[0].mxu0 %v274
    %v389 = vpop.f32.mrb[0].mxu0
    %v390 = vadd.f32 0.0, %v389
    %v391 = vpop.f32.mrb[0].mxu0
    %392 = vmatprep.mubr.f32.mxu0 0.0
    %393 = vmatmul.mubr.f32.gmra.mrb[0].mxu0 %v277
    %v394 = vpop.f32.mrb[0].mxu0
    %v395 = vadd.f32 0.0, %v394
    %v396 = vpop.f32.mrb[0].mxu0
    %397 = vmatprep.mubr.f32.mxu0 0.0
    %398 = vmatmul.mubr.f32.gmra.mrb[0].mxu0 %v280
    %v399 = vpop.f32.mrb[0].mxu0
    %v400 = vadd.f32 0.0, %v399
    %v401 = vpop.f32.mrb[0].mxu0
    %402 = vmatprep.mubr.f32.mxu0 0.0
    %403 = vmatmul.mubr.f32.gmra.mrb[0].mxu0 %v283
    %v404 = vpop.f32.mrb[0].mxu0
    %v405 = vadd.f32 0.0, %v404
    %v406 = vpop.f32.mrb[0].mxu0
    %407 = vmatprep.mubr.f32.mxu0 0.0
    %408 = vmatmul.mubr.f32.gmra.mrb[0].mxu0 %v286
    %v409 = vpop.f32.mrb[0].mxu0
    %v410 = vadd.f32 0.0, %v409
    %v411 = vpop.f32.mrb[0].mxu0
    %412 = vmatprep.mubr.f32.mxu0 0.0
    %413 = vmatmul.mubr.f32.gmra.mrb[0].mxu0 %v289
    %v414 = vpop.f32.mrb[0].mxu0
    %v415 = vadd.f32 0.0, %v414
    %v416 = vpop.f32.mrb[0].mxu0
    %417 = vmatprep.mubr.f32.mxu0 0.0
    %418 = vmatmul.mubr.f32.gmra.mrb[0].mxu0 %v292
    %v419 = vpop.f32.mrb[0].mxu0
    %v420 = vadd.f32 0.0, %v419
    %v421 = vpop.f32.mrb[0].mxu0
    %422 = vmatprep.mubr.f32.mxu0 0.0
    %423 = vmatmul.mubr.f32.gmra.mrb[0].mxu0 %v295
    %v424 = vpop.f32.mrb[0].mxu0
    %v425 = vadd.f32 0.0, %v424
    %v426 = vpop.f32.mrb[0].mxu0
    %427 = vmatprep.mubr.f32.mxu0 0.0
    %428 = vmatmul.mubr.f32.gmra.mrb[0].mxu0 %v298
    %v429 = vpop.f32.mrb[0].mxu0
    %v430 = vadd.f32 0.0, %v429
    %v431 = vpop.f32.mrb[0].mxu0
    %432 = vmatprep.mubr.f32.mxu0 0.0
    %433 = vmatmul.mubr.f32.gmra.mrb[0].mxu0 %v301
    %v434 = vpop.f32.mrb[0].mxu0
    %v435 = vadd.f32 0.0, %v434
    %v436 = vpop.f32.mrb[0].mxu0
    %437 = vmatprep.mubr.f32.mxu0 0.0
    %438 = vmatmul.mubr.f32.gmra.mrb[0].mxu0 %v304
    %v439 = vpop.f32.mrb[0].mxu0
    %v440 = vadd.f32 0.0, %v439
    %v441 = vpop.f32.mrb[0].mxu0
    %442 = vmatprep.mubr.f32.mxu0 0.0
    %443 = vmatmul.mubr.f32.gmra.mrb[0].mxu0 %v307
    %v444 = vpop.f32.mrb[0].mxu0
    %v445 = vadd.f32 0.0, %v444
    %v446 = vpop.f32.mrb[0].mxu0
    %447 = vmatprep.mubr.f32.mxu0 0.0
    %448 = vmatmul.mubr.f32.gmra.mrb[0].mxu0 %v310
    %v449 = vpop.f32.mrb[0].mxu0
    %v450 = vadd.f32 0.0, %v449
    %v451 = vpop.f32.mrb[0].mxu0
    %452 = vmatprep.mubr.f32.mxu0 0.0
    %453 = vmatmul.mubr.f32.gmra.mrb[0].mxu0 %v313
    %v454 = vpop.f32.mrb[0].mxu0
    %v455 = vadd.f32 0.0, %v454
    %v456 = vpop.f32.mrb[0].mxu0
    %457 = vmatprep.mubr.f32.mxu0 0.0
    %458 = vmatmul.mubr.f32.gmra.mrb[0].mxu0 %v316
    %v459 = vpop.f32.mrb[0].mxu0
    %v460 = vadd.f32 0.0, %v459
    %v461 = vpop.f32.mrb[0].mxu0
    %462 = vdwg.mxu0
    %v464 = vsel %vm269, %v139, 0
    %v467 = vsel %vm269, %v140, 0
    %v470 = vsel %vm269, %v141, 0
    %v473 = vsel %vm269, %v142, 0
    %v476 = vsel %vm269, %v143, 0
    %v479 = vsel %vm269, %v144, 0
    %v482 = vsel %vm269, %v145, 0
    %v485 = vsel %vm269, %v146, 0
    %v488 = vsel %vm269, %v147, 0
    %v491 = vsel %vm269, %v148, 0
    %v494 = vsel %vm269, %v149, 0
    %v497 = vsel %vm269, %v150, 0
    %v500 = vsel %vm269, %v151, 0
    %v503 = vsel %vm269, %v152, 0
    %v506 = vsel %vm269, %v153, 0
    %v509 = vsel %vm269, %v154, 0
    %511 = vmatprep.subr.mxu0 0.0
    %512 = vmatpush1.msra.mxu0 %v155
    %513 = vmatprep.subr.mxu0 0.0
    %514 = vmatpush1.msra.mxu0 0.0
    %515 = vmatprep.subr.mxu0 0.0
    %516 = vmatpush1.msra.mxu0 0.0
    %517 = vmatprep.subr.mxu0 0.0
    %518 = vmatpush1.msra.mxu0 0.0
    %519 = vmatprep.subr.mxu0 0.0
    %520 = vmatpush1.msra.mxu0 0.0
    %521 = vmatprep.subr.mxu0 0.0
    %522 = vmatpush1.msra.mxu0 0.0
    %523 = vmatprep.subr.mxu0 0.0
    %524 = vmatpush1.msra.mxu0 0.0
    %525 = vmatprep.subr.mxu0 0.0
    %526 = vmatpush1.msra.mxu0 0.0
    %527 = vmatprep.subr.mxu0 0.0
    %528 = vmatpush1.msra.mxu0 0.0
    %529 = vmatprep.subr.mxu0 0.0
    %530 = vmatpush1.msra.mxu0 0.0
    %531 = vmatprep.subr.mxu0 0.0
    %532 = vmatpush1.msra.mxu0 0.0
    %533 = vmatprep.subr.mxu0 0.0
    %534 = vmatpush1.msra.mxu0 0.0
    %535 = vmatprep.subr.mxu0 0.0
    %536 = vmatpush1.msra.mxu0 0.0
    %537 = vmatprep.subr.mxu0 0.0
    %538 = vmatpush1.msra.mxu0 0.0
    %539 = vmatprep.subr.mxu0 0.0
    %540 = vmatpush1.msra.mxu0 0.0
    %541 = vmatprep.subr.mxu0 0.0
    %542 = vmatpush1.msra.mxu0 0.0
    %543 = vmatprep.subr.mxu0 0.0
    %544 = vmatpush1.msra.mxu0 0.0
    %545 = vmatprep.subr.mxu0 0.0
    %546 = vmatpush1.msra.mxu0 0.0
    %547 = vmatprep.subr.mxu0 0.0
    %548 = vmatpush1.msra.mxu0 0.0
    %549 = vmatprep.subr.mxu0 0.0
    %550 = vmatpush1.msra.mxu0 0.0
    %551 = vmatprep.subr.mxu0 0.0
    %552 = vmatpush1.msra.mxu0 0.0
    %553 = vmatprep.subr.mxu0 0.0
    %554 = vmatpush1.msra.mxu0 0.0
    %555 = vmatprep.subr.mxu0 0.0
    %556 = vmatpush1.msra.mxu0 0.0
    %557 = vmatprep.subr.mxu0 0.0
    %558 = vmatpush1.msra.mxu0 0.0
    %559 = vmatprep.subr.mxu0 0.0
    %560 = vmatpush1.msra.mxu0 0.0
    %561 = vmatprep.subr.mxu0 0.0
    %562 = vmatpush1.msra.mxu0 0.0
    %563 = vmatprep.subr.mxu0 0.0
    %564 = vmatpush1.msra.mxu0 0.0
    %565 = vmatprep.subr.mxu0 0.0
    %566 = vmatpush1.msra.mxu0 0.0
    %567 = vmatprep.subr.mxu0 0.0
    %568 = vmatpush1.msra.mxu0 0.0
    %569 = vmatprep.subr.mxu0 0.0
    %570 = vmatpush1.msra.mxu0 0.0
    %571 = vmatprep.subr.mxu0 0.0
    %572 = vmatpush1.msra.mxu0 0.0
    %573 = vmatprep.subr.mxu0 0.0
    %574 = vmatpush1.msra.mxu0 0.0
    %575 = vmatprep.mubr.f32.mxu0 0.0
    %576 = vmatmul.mubr.f32.gmra.mrb[0].mxu0 %v464
    %v577 = vpop.f32.mrb[0].mxu0
    %v578 = vadd.f32 %v385, %v577
    %v579 = vpop.f32.mrb[0].mxu0
    %580 = vmatprep.mubr.f32.mxu0 0.0
    %581 = vmatmul.mubr.f32.gmra.mrb[0].mxu0 %v467
    %v582 = vpop.f32.mrb[0].mxu0
    %v583 = vadd.f32 %v390, %v582
    %v584 = vpop.f32.mrb[0].mxu0
    %585 = vmatprep.mubr.f32.mxu0 0.0
    %586 = vmatmul.mubr.f32.gmra.mrb[0].mxu0 %v470
    %v587 = vpop.f32.mrb[0].mxu0
    %v588 = vadd.f32 %v395, %v587
    %v589 = vpop.f32.mrb[0].mxu0
    %590 = vmatprep.mubr.f32.mxu0 0.0
    %591 = vmatmul.mubr.f32.gmra.mrb[0].mxu0 %v473
    %v592 = vpop.f32.mrb[0].mxu0
    %v593 = vadd.f32 %v400, %v592
    %v594 = vpop.f32.mrb[0].mxu0
    %595 = vmatprep.mubr.f32.mxu0 0.0
    %596 = vmatmul.mubr.f32.gmra.mrb[0].mxu0 %v476
    %v597 = vpop.f32.mrb[0].mxu0
    %v598 = vadd.f32 %v405, %v597
    %v599 = vpop.f32.mrb[0].mxu0
    %600 = vmatprep.mubr.f32.mxu0 0.0
    %601 = vmatmul.mubr.f32.gmra.mrb[0].mxu0 %v479
    %v602 = vpop.f32.mrb[0].mxu0
    %v603 = vadd.f32 %v410, %v602
    %v604 = vpop.f32.mrb[0].mxu0
    %605 = vmatprep.mubr.f32.mxu0 0.0
    %606 = vmatmul.mubr.f32.gmra.mrb[0].mxu0 %v482
    %v607 = vpop.f32.mrb[0].mxu0
    %v608 = vadd.f32 %v415, %v607
    %v609 = vpop.f32.mrb[0].mxu0
    %610 = vmatprep.mubr.f32.mxu0 0.0
    %611 = vmatmul.mubr.f32.gmra.mrb[0].mxu0 %v485
    %v612 = vpop.f32.mrb[0].mxu0
    %v613 = vadd.f32 %v420, %v612
    %v614 = vpop.f32.mrb[0].mxu0
    %615 = vmatprep.mubr.f32.mxu0 0.0
    %616 = vmatmul.mubr.f32.gmra.mrb[0].mxu0 %v488
    %v617 = vpop.f32.mrb[0].mxu0
    %v618 = vadd.f32 %v425, %v617
    %v619 = vpop.f32.mrb[0].mxu0
    %620 = vmatprep.mubr.f32.mxu0 0.0
    %621 = vmatmul.mubr.f32.gmra.mrb[0].mxu0 %v491
    %v622 = vpop.f32.mrb[0].mxu0
    %v623 = vadd.f32 %v430, %v622
    %v624 = vpop.f32.mrb[0].mxu0
    %625 = vmatprep.mubr.f32.mxu0 0.0
    %626 = vmatmul.mubr.f32.gmra.mrb[0].mxu0 %v494
    %v627 = vpop.f32.mrb[0].mxu0
    %v628 = vadd.f32 %v435, %v627
    %v629 = vpop.f32.mrb[0].mxu0
    %630 = vmatprep.mubr.f32.mxu0 0.0
    %631 = vmatmul.mubr.f32.gmra.mrb[0].mxu0 %v497
    %v632 = vpop.f32.mrb[0].mxu0
    %v633 = vadd.f32 %v440, %v632
    %v634 = vpop.f32.mrb[0].mxu0
    %635 = vmatprep.mubr.f32.mxu0 0.0
    %636 = vmatmul.mubr.f32.gmra.mrb[0].mxu0 %v500
    %v637 = vpop.f32.mrb[0].mxu0
    %v638 = vadd.f32 %v445, %v637
    %v639 = vpop.f32.mrb[0].mxu0
    %640 = vmatprep.mubr.f32.mxu0 0.0
    %641 = vmatmul.mubr.f32.gmra.mrb[0].mxu0 %v503
    %v642 = vpop.f32.mrb[0].mxu0
    %v643 = vadd.f32 %v450, %v642
    %v644 = vpop.f32.mrb[0].mxu0
    %645 = vmatprep.mubr.f32.mxu0 0.0
    %646 = vmatmul.mubr.f32.gmra.mrb[0].mxu0 %v506
    %v647 = vpop.f32.mrb[0].mxu0
    %v648 = vadd.f32 %v455, %v647
    %v649 = vpop.f32.mrb[0].mxu0
    %650 = vmatprep.mubr.f32.mxu0 0.0
    %651 = vmatmul.mubr.f32.gmra.mrb[0].mxu0 %v509
    %v652 = vpop.f32.mrb[0].mxu0
    %v653 = vadd.f32 %v460, %v652
    %v654 = vpop.f32.mrb[0].mxu0
    %655 = vdwg.mxu0
    %v656 = vld [vmem:[%s2] sm:$0xff]
    %v657 = vld [vmem:[%s2 + $0x8] sm:$0xff]
    %v658 = vld [vmem:[%s2 + $0x10] sm:$0xff]
    %v659 = vld [vmem:[%s2 + $0x18] sm:$0xff]
    %v660 = vld [vmem:[%s2 + $0x20] sm:$0xff]
    %v661 = vld [vmem:[%s2 + $0x28] sm:$0xff]
    %v662 = vld [vmem:[%s2 + $0x30] sm:$0xff]
    %v663 = vld [vmem:[%s2 + $0x38] sm:$0xff]
    %v664 = vld [vmem:[%s2 + $0x40] sm:$0xff]
    %v665 = vld [vmem:[%s2 + $0x48] sm:$0xff]
    %v666 = vld [vmem:[%s2 + $0x50] sm:$0xff]
    %v667 = vld [vmem:[%s2 + $0x58] sm:$0xff]
    %v668 = vld [vmem:[%s2 + $0x60] sm:$0xff]
    %v669 = vld [vmem:[%s2 + $0x68] sm:$0xff]
    %v670 = vld [vmem:[%s2 + $0x70] sm:$0xff]
    %v671 = vld [vmem:[%s2 + $0x78] sm:$0xff]
    %672 = vset.pattern.permute.xlu0 0
    %673 = vperm.xlu0 %672, %v656
    %v674 = vpop.permute.xlu0 %673
    %675 = vset.pattern.permute.xlu0 0
    %676 = vperm.xlu0 %675, %v657
    %v677 = vpop.permute.xlu0 %676
    %678 = vset.pattern.permute.xlu0 0
    %679 = vperm.xlu0 %678, %v658
    %v680 = vpop.permute.xlu0 %679
    %681 = vset.pattern.permute.xlu0 0
    %682 = vperm.xlu0 %681, %v659
    %v683 = vpop.permute.xlu0 %682
    %684 = vset.pattern.permute.xlu0 0
    %685 = vperm.xlu0 %684, %v660
    %v686 = vpop.permute.xlu0 %685
    %687 = vset.pattern.permute.xlu0 0
    %688 = vperm.xlu0 %687, %v661
    %v689 = vpop.permute.xlu0 %688
    %690 = vset.pattern.permute.xlu0 0
    %691 = vperm.xlu0 %690, %v662
    %v692 = vpop.permute.xlu0 %691
    %693 = vset.pattern.permute.xlu0 0
    %694 = vperm.xlu0 %693, %v663
    %v695 = vpop.permute.xlu0 %694
    %696 = vset.pattern.permute.xlu0 0
    %697 = vperm.xlu0 %696, %v664
    %v698 = vpop.permute.xlu0 %697
    %699 = vset.pattern.permute.xlu0 0
    %700 = vperm.xlu0 %699, %v665
    %v701 = vpop.permute.xlu0 %700
    %702 = vset.pattern.permute.xlu0 0
    %703 = vperm.xlu0 %702, %v666
    %v704 = vpop.permute.xlu0 %703
    %705 = vset.pattern.permute.xlu0 0
    %706 = vperm.xlu0 %705, %v667
    %v707 = vpop.permute.xlu0 %706
    %708 = vset.pattern.permute.xlu0 0
    %709 = vperm.xlu0 %708, %v668
    %v710 = vpop.permute.xlu0 %709
    %711 = vset.pattern.permute.xlu0 0
    %712 = vperm.xlu0 %711, %v669
    %v713 = vpop.permute.xlu0 %712
    %714 = vset.pattern.permute.xlu0 0
    %715 = vperm.xlu0 %714, %v670
    %v716 = vpop.permute.xlu0 %715
    %717 = vset.pattern.permute.xlu0 0
    %718 = vperm.xlu0 %717, %v671
    %v719 = vpop.permute.xlu0 %718
    %vm720 = vcmp.eq.s32.totalorder %v42, %v674
    %vm721 = vcmp.eq.s32.totalorder %v42, %v677
    %vm722 = vcmp.eq.s32.totalorder %v42, %v680
    %vm723 = vcmp.eq.s32.totalorder %v42, %v683
    %vm724 = vcmp.eq.s32.totalorder %v42, %v686
    %vm725 = vcmp.eq.s32.totalorder %v42, %v689
    %vm726 = vcmp.eq.s32.totalorder %v42, %v692
    %vm727 = vcmp.eq.s32.totalorder %v42, %v695
    %vm728 = vcmp.eq.s32.totalorder %v42, %v698
    %vm729 = vcmp.eq.s32.totalorder %v42, %v701
    %vm730 = vcmp.eq.s32.totalorder %v42, %v704
    %vm731 = vcmp.eq.s32.totalorder %v42, %v707
    %vm732 = vcmp.eq.s32.totalorder %v42, %v710
    %vm733 = vcmp.eq.s32.totalorder %v42, %v713
    %vm734 = vcmp.eq.s32.totalorder %v42, %v716
    %vm735 = vcmp.eq.s32.totalorder %v42, %v719
    %v736 = vsel %vm720, 1, 0
    %v737 = vsel %vm721, 1, 0
    %v738 = vsel %vm722, 1, 0
    %v739 = vsel %vm723, 1, 0
    %v740 = vsel %vm724, 1, 0
    %v741 = vsel %vm725, 1, 0
    %v742 = vsel %vm726, 1, 0
    %v743 = vsel %vm727, 1, 0
    %v744 = vsel %vm728, 1, 0
    %v745 = vsel %vm729, 1, 0
    %v746 = vsel %vm730, 1, 0
    %v747 = vsel %vm731, 1, 0
    %v748 = vsel %vm732, 1, 0
    %v749 = vsel %vm733, 1, 0
    %v750 = vsel %vm734, 1, 0
    %v751 = vsel %vm735, 1, 0
    %v752 = vcvt.s32.f32 %v736
    %v753 = vcvt.s32.f32 %v737
    %v754 = vcvt.s32.f32 %v738
    %v755 = vcvt.s32.f32 %v739
    %v756 = vcvt.s32.f32 %v740
    %v757 = vcvt.s32.f32 %v741
    %v758 = vcvt.s32.f32 %v742
    %v759 = vcvt.s32.f32 %v743
    %v760 = vcvt.s32.f32 %v744
    %v761 = vcvt.s32.f32 %v745
    %v762 = vcvt.s32.f32 %v746
    %v763 = vcvt.s32.f32 %v747
    %v764 = vcvt.s32.f32 %v748
    %v765 = vcvt.s32.f32 %v749
    %v766 = vcvt.s32.f32 %v750
    %v767 = vcvt.s32.f32 %v751
    %v768 = vld [vmem:[%s5] sm:$0xff]
    %v769 = vld [vmem:[%s5 + $0x8] sm:$0xff]
    %vm770 = vcmask 130048
    %v772 = vsel %vm770, %v752, 0
    %v775 = vsel %vm770, %v753, 0
    %v778 = vsel %vm770, %v754, 0
    %v781 = vsel %vm770, %v755, 0
    %v784 = vsel %vm770, %v756, 0
    %v787 = vsel %vm770, %v757, 0
    %v790 = vsel %vm770, %v758, 0
    %v793 = vsel %vm770, %v759, 0
    %v796 = vsel %vm770, %v760, 0
    %v799 = vsel %vm770, %v761, 0
    %v802 = vsel %vm770, %v762, 0
    %v805 = vsel %vm770, %v763, 0
    %v808 = vsel %vm770, %v764, 0
    %v811 = vsel %vm770, %v765, 0
    %v814 = vsel %vm770, %v766, 0
    %v817 = vsel %vm770, %v767, 0
    %819 = vmatprep.subr.mxu0 0.0
    %820 = vmatpush1.msra.mxu0 %v768
    %821 = vmatprep.subr.mxu0 0.0
    %822 = vmatpush1.msra.mxu0 %v769
    %823 = vmatprep.subr.mxu0 0.0
    %824 = vmatpush1.msra.mxu0 0.0
    %825 = vmatprep.subr.mxu0 0.0
    %826 = vmatpush1.msra.mxu0 0.0
    %827 = vmatprep.subr.mxu0 0.0
    %828 = vmatpush1.msra.mxu0 0.0
    %829 = vmatprep.subr.mxu0 0.0
    %830 = vmatpush1.msra.mxu0 0.0
    %831 = vmatprep.subr.mxu0 0.0
    %832 = vmatpush1.msra.mxu0 0.0
    %833 = vmatprep.subr.mxu0 0.0
    %834 = vmatpush1.msra.mxu0 0.0
    %835 = vmatprep.subr.mxu0 0.0
    %836 = vmatpush1.msra.mxu0 0.0
    %837 = vmatprep.subr.mxu0 0.0
    %838 = vmatpush1.msra.mxu0 0.0
    %839 = vmatprep.subr.mxu0 0.0
    %840 = vmatpush1.msra.mxu0 0.0
    %841 = vmatprep.subr.mxu0 0.0
    %842 = vmatpush1.msra.mxu0 0.0
    %843 = vmatprep.subr.mxu0 0.0
    %844 = vmatpush1.msra.mxu0 0.0
    %845 = vmatprep.subr.mxu0 0.0
    %846 = vmatpush1.msra.mxu0 0.0
    %847 = vmatprep.subr.mxu0 0.0
    %848 = vmatpush1.msra.mxu0 0.0
    %849 = vmatprep.subr.mxu0 0.0
    %850 = vmatpush1.msra.mxu0 0.0
    %851 = vmatprep.subr.mxu0 0.0
    %852 = vmatpush1.msra.mxu0 0.0
    %853 = vmatprep.subr.mxu0 0.0
    %854 = vmatpush1.msra.mxu0 0.0
    %855 = vmatprep.subr.mxu0 0.0
    %856 = vmatpush1.msra.mxu0 0.0
    %857 = vmatprep.subr.mxu0 0.0
    %858 = vmatpush1.msra.mxu0 0.0
    %859 = vmatprep.subr.mxu0 0.0
    %860 = vmatpush1.msra.mxu0 0.0
    %861 = vmatprep.subr.mxu0 0.0
    %862 = vmatpush1.msra.mxu0 0.0
    %863 = vmatprep.subr.mxu0 0.0
    %864 = vmatpush1.msra.mxu0 0.0
    %865 = vmatprep.subr.mxu0 0.0
    %866 = vmatpush1.msra.mxu0 0.0
    %867 = vmatprep.subr.mxu0 0.0
    %868 = vmatpush1.msra.mxu0 0.0
    %869 = vmatprep.subr.mxu0 0.0
    %870 = vmatpush1.msra.mxu0 0.0
    %871 = vmatprep.subr.mxu0 0.0
    %872 = vmatpush1.msra.mxu0 0.0
    %873 = vmatprep.subr.mxu0 0.0
    %874 = vmatpush1.msra.mxu0 0.0
    %875 = vmatprep.subr.mxu0 0.0
    %876 = vmatpush1.msra.mxu0 0.0
    %877 = vmatprep.subr.mxu0 0.0
    %878 = vmatpush1.msra.mxu0 0.0
    %879 = vmatprep.subr.mxu0 0.0
    %880 = vmatpush1.msra.mxu0 0.0
    %881 = vmatprep.subr.mxu0 0.0
    %882 = vmatpush1.msra.mxu0 0.0
    %883 = vmatprep.mubr.f32.mxu0 0.0
    %884 = vmatmul.mubr.f32.gmra.mrb[0].mxu0 %v772
    %v885 = vpop.f32.mrb[0].mxu0
    %v886 = vadd.f32 0.0, %v885
    %v887 = vpop.f32.mrb[0].mxu0
    %888 = vmatprep.mubr.f32.mxu0 0.0
    %889 = vmatmul.mubr.f32.gmra.mrb[0].mxu0 %v775
    %v890 = vpop.f32.mrb[0].mxu0
    %v891 = vadd.f32 0.0, %v890
    %v892 = vpop.f32.mrb[0].mxu0
    %893 = vmatprep.mubr.f32.mxu0 0.0
    %894 = vmatmul.mubr.f32.gmra.mrb[0].mxu0 %v778
    %v895 = vpop.f32.mrb[0].mxu0
    %v896 = vadd.f32 0.0, %v895
    %v897 = vpop.f32.mrb[0].mxu0
    %898 = vmatprep.mubr.f32.mxu0 0.0
    %899 = vmatmul.mubr.f32.gmra.mrb[0].mxu0 %v781
    %v900 = vpop.f32.mrb[0].mxu0
    %v901 = vadd.f32 0.0, %v900
    %v902 = vpop.f32.mrb[0].mxu0
    %903 = vmatprep.mubr.f32.mxu0 0.0
    %904 = vmatmul.mubr.f32.gmra.mrb[0].mxu0 %v784
    %v905 = vpop.f32.mrb[0].mxu0
    %v906 = vadd.f32 0.0, %v905
    %v907 = vpop.f32.mrb[0].mxu0
    %908 = vmatprep.mubr.f32.mxu0 0.0
    %909 = vmatmul.mubr.f32.gmra.mrb[0].mxu0 %v787
    %v910 = vpop.f32.mrb[0].mxu0
    %v911 = vadd.f32 0.0, %v910
    %v912 = vpop.f32.mrb[0].mxu0
    %913 = vmatprep.mubr.f32.mxu0 0.0
    %914 = vmatmul.mubr.f32.gmra.mrb[0].mxu0 %v790
    %v915 = vpop.f32.mrb[0].mxu0
    %v916 = vadd.f32 0.0, %v915
    %v917 = vpop.f32.mrb[0].mxu0
    %918 = vmatprep.mubr.f32.mxu0 0.0
    %919 = vmatmul.mubr.f32.gmra.mrb[0].mxu0 %v793
    %v920 = vpop.f32.mrb[0].mxu0
    %v921 = vadd.f32 0.0, %v920
    %v922 = vpop.f32.mrb[0].mxu0
    %923 = vmatprep.mubr.f32.mxu0 0.0
    %924 = vmatmul.mubr.f32.gmra.mrb[0].mxu0 %v796
    %v925 = vpop.f32.mrb[0].mxu0
    %v926 = vadd.f32 0.0, %v925
    %v927 = vpop.f32.mrb[0].mxu0
    %928 = vmatprep.mubr.f32.mxu0 0.0
    %929 = vmatmul.mubr.f32.gmra.mrb[0].mxu0 %v799
    %v930 = vpop.f32.mrb[0].mxu0
    %v931 = vadd.f32 0.0, %v930
    %v932 = vpop.f32.mrb[0].mxu0
    %933 = vmatprep.mubr.f32.mxu0 0.0
    %934 = vmatmul.mubr.f32.gmra.mrb[0].mxu0 %v802
    %v935 = vpop.f32.mrb[0].mxu0
    %v936 = vadd.f32 0.0, %v935
    %v937 = vpop.f32.mrb[0].mxu0
    %938 = vmatprep.mubr.f32.mxu0 0.0
    %939 = vmatmul.mubr.f32.gmra.mrb[0].mxu0 %v805
    %v940 = vpop.f32.mrb[0].mxu0
    %v941 = vadd.f32 0.0, %v940
    %v942 = vpop.f32.mrb[0].mxu0
    %943 = vmatprep.mubr.f32.mxu0 0.0
    %944 = vmatmul.mubr.f32.gmra.mrb[0].mxu0 %v808
    %v945 = vpop.f32.mrb[0].mxu0
    %v946 = vadd.f32 0.0, %v945
    %v947 = vpop.f32.mrb[0].mxu0
    %948 = vmatprep.mubr.f32.mxu0 0.0
    %949 = vmatmul.mubr.f32.gmra.mrb[0].mxu0 %v811
    %v950 = vpop.f32.mrb[0].mxu0
    %v951 = vadd.f32 0.0, %v950
    %v952 = vpop.f32.mrb[0].mxu0
    %953 = vmatprep.mubr.f32.mxu0 0.0
    %954 = vmatmul.mubr.f32.gmra.mrb[0].mxu0 %v814
    %v955 = vpop.f32.mrb[0].mxu0
    %v956 = vadd.f32 0.0, %v955
    %v957 = vpop.f32.mrb[0].mxu0
    %958 = vmatprep.mubr.f32.mxu0 0.0
    %959 = vmatmul.mubr.f32.gmra.mrb[0].mxu0 %v817
    %v960 = vpop.f32.mrb[0].mxu0
    %v961 = vadd.f32 0.0, %v960
    %v962 = vpop.f32.mrb[0].mxu0
    %963 = vdwg.mxu0
    %v964 = vadd.f32 %v578, %v886
    %v965 = vadd.f32 %v583, %v891
    %v966 = vadd.f32 %v588, %v896
    %v967 = vadd.f32 %v593, %v901
    %v968 = vadd.f32 %v598, %v906
    %v969 = vadd.f32 %v603, %v911
    %v970 = vadd.f32 %v608, %v916
    %v971 = vadd.f32 %v613, %v921
    %v972 = vadd.f32 %v618, %v926
    %v973 = vadd.f32 %v623, %v931
    %v974 = vadd.f32 %v628, %v936
    %v975 = vadd.f32 %v633, %v941
    %v976 = vadd.f32 %v638, %v946
    %v977 = vadd.f32 %v643, %v951
    %v978 = vadd.f32 %v648, %v956
    %v979 = vadd.f32 %v653, %v961
    %v980 = vld [vmem:[%s6] sm:$0x1]
    %v982 = vlaneseq
    %v983 = vshrl.u32 %v982, 7
    %v984 = vsub.s32 0, %v983
    %v985 = vrot.slane %v980, %v984
    %v987 = vadd.f32 %v964, %v985
    %v988 = vadd.f32 %v965, %v985
    %v989 = vadd.f32 %v966, %v985
    %v990 = vadd.f32 %v967, %v985
    %v991 = vadd.f32 %v968, %v985
    %v992 = vadd.f32 %v969, %v985
    %v993 = vadd.f32 %v970, %v985
    %v994 = vadd.f32 %v971, %v985
    %v995 = vadd.f32 %v972, %v985
    %v996 = vadd.f32 %v973, %v985
    %v997 = vadd.f32 %v974, %v985
    %v998 = vadd.f32 %v975, %v985
    %v999 = vadd.f32 %v976, %v985
    %v1000 = vadd.f32 %v977, %v985
    %v1001 = vadd.f32 %v978, %v985
    %v1002 = vadd.f32 %v979, %v985
    %v1003 = vmul.f32 %v987, 0.2
    %v1004 = vmul.f32 %v988, 0.2
    %v1005 = vmul.f32 %v989, 0.2
    %v1006 = vmul.f32 %v990, 0.2
    %v1007 = vmul.f32 %v991, 0.2
    %v1008 = vmul.f32 %v992, 0.2
    %v1009 = vmul.f32 %v993, 0.2
    %v1010 = vmul.f32 %v994, 0.2
    %v1011 = vmul.f32 %v995, 0.2
    %v1012 = vmul.f32 %v996, 0.2
    %v1013 = vmul.f32 %v997, 0.2
    %v1014 = vmul.f32 %v998, 0.2
    %v1015 = vmul.f32 %v999, 0.2
    %v1016 = vmul.f32 %v1000, 0.2
    %v1017 = vmul.f32 %v1001, 0.2
    %v1018 = vmul.f32 %v1002, 0.2
    %v1019 = vmax.f32 %v987, %v1003
    %v1020 = vmax.f32 %v988, %v1004
    %v1021 = vmax.f32 %v989, %v1005
    %v1022 = vmax.f32 %v990, %v1006
    %v1023 = vmax.f32 %v991, %v1007
    %v1024 = vmax.f32 %v992, %v1008
    %v1025 = vmax.f32 %v993, %v1009
    %v1026 = vmax.f32 %v994, %v1010
    %v1027 = vmax.f32 %v995, %v1011
    %v1028 = vmax.f32 %v996, %v1012
    %v1029 = vmax.f32 %v997, %v1013
    %v1030 = vmax.f32 %v998, %v1014
    %v1031 = vmax.f32 %v999, %v1015
    %v1032 = vmax.f32 %v1000, %v1016
    %v1033 = vmax.f32 %v1001, %v1017
    %v1034 = vmax.f32 %v1002, %v1018
    %v1035 = vld [vmem:[%s7] sm:$0xff]
    %v1036 = vld [vmem:[%s7 + $0x8] sm:$0xff]
    %v1037 = vld [vmem:[%s7 + $0x10] sm:$0xff]
    %v1038 = vld [vmem:[%s7 + $0x18] sm:$0xff]
    %v1039 = vld [vmem:[%s7 + $0x20] sm:$0xff]
    %v1040 = vld [vmem:[%s7 + $0x28] sm:$0xff]
    %v1041 = vld [vmem:[%s7 + $0x30] sm:$0xff]
    %v1042 = vld [vmem:[%s7 + $0x38] sm:$0xff]
    %v1043 = vld [vmem:[%s7 + $0x40] sm:$0xff]
    %v1044 = vld [vmem:[%s7 + $0x48] sm:$0xff]
    %v1045 = vld [vmem:[%s7 + $0x50] sm:$0xff]
    %v1046 = vld [vmem:[%s7 + $0x58] sm:$0xff]
    %v1047 = vld [vmem:[%s7 + $0x60] sm:$0xff]
    %v1048 = vld [vmem:[%s7 + $0x68] sm:$0xff]
    %v1049 = vld [vmem:[%s7 + $0x70] sm:$0xff]
    %v1050 = vld [vmem:[%s7 + $0x78] sm:$0xff]
    %v1051 = vld [vmem:[%s8] sm:$0x1]
    %v1053 = vlaneseq
    %v1054 = vshrl.u32 %v1053, 7
    %v1055 = vsub.s32 0, %v1054
    %v1056 = vrot.slane %v1051, %v1055
    %1058 = vmatprep.subr.mxu0 0.0
    %1059 = vmatpush1.msra.mxu0 %v1035
    %1060 = vmatprep.subr.mxu0 0.0
    %1061 = vmatpush1.msra.mxu0 %v1036
    %1062 = vmatprep.subr.mxu0 0.0
    %1063 = vmatpush1.msra.mxu0 %v1037
    %1064 = vmatprep.subr.mxu0 0.0
    %1065 = vmatpush1.msra.mxu0 %v1038
    %1066 = vmatprep.subr.mxu0 0.0
    %1067 = vmatpush1.msra.mxu0 %v1039
    %1068 = vmatprep.subr.mxu0 0.0
    %1069 = vmatpush1.msra.mxu0 %v1040
    %1070 = vmatprep.subr.mxu0 0.0
    %1071 = vmatpush1.msra.mxu0 %v1041
    %1072 = vmatprep.subr.mxu0 0.0
    %1073 = vmatpush1.msra.mxu0 %v1042
    %1074 = vmatprep.subr.mxu0 0.0
    %1075 = vmatpush1.msra.mxu0 %v1043
    %1076 = vmatprep.subr.mxu0 0.0
    %1077 = vmatpush1.msra.mxu0 %v1044
    %1078 = vmatprep.subr.mxu0 0.0
    %1079 = vmatpush1.msra.mxu0 %v1045
    %1080 = vmatprep.subr.mxu0 0.0
    %1081 = vmatpush1.msra.mxu0 %v1046
    %1082 = vmatprep.subr.mxu0 0.0
    %1083 = vmatpush1.msra.mxu0 %v1047
    %1084 = vmatprep.subr.mxu0 0.0
    %1085 = vmatpush1.msra.mxu0 %v1048
    %1086 = vmatprep.subr.mxu0 0.0
    %1087 = vmatpush1.msra.mxu0 %v1049
    %1088 = vmatprep.subr.mxu0 0.0
    %1089 = vmatpush1.msra.mxu0 %v1050
    %1090 = vmatprep.subr.mxu0 0.0
    %1091 = vmatpush1.msra.mxu0 0.0
    %1092 = vmatprep.subr.mxu0 0.0
    %1093 = vmatpush1.msra.mxu0 0.0
    %1094 = vmatprep.subr.mxu0 0.0
    %1095 = vmatpush1.msra.mxu0 0.0
    %1096 = vmatprep.subr.mxu0 0.0
    %1097 = vmatpush1.msra.mxu0 0.0
    %1098 = vmatprep.subr.mxu0 0.0
    %1099 = vmatpush1.msra.mxu0 0.0
    %1100 = vmatprep.subr.mxu0 0.0
    %1101 = vmatpush1.msra.mxu0 0.0
    %1102 = vmatprep.subr.mxu0 0.0
    %1103 = vmatpush1.msra.mxu0 0.0
    %1104 = vmatprep.subr.mxu0 0.0
    %1105 = vmatpush1.msra.mxu0 0.0
    %1106 = vmatprep.subr.mxu0 0.0
    %1107 = vmatpush1.msra.mxu0 0.0
    %1108 = vmatprep.subr.mxu0 0.0
    %1109 = vmatpush1.msra.mxu0 0.0
    %1110 = vmatprep.subr.mxu0 0.0
    %1111 = vmatpush1.msra.mxu0 0.0
    %1112 = vmatprep.subr.mxu0 0.0
    %1113 = vmatpush1.msra.mxu0 0.0
    %1114 = vmatprep.subr.mxu0 0.0
    %1115 = vmatpush1.msra.mxu0 0.0
    %1116 = vmatprep.subr.mxu0 0.0
    %1117 = vmatpush1.msra.mxu0 0.0
    %1118 = vmatprep.subr.mxu0 0.0
    %1119 = vmatpush1.msra.mxu0 0.0
    %1120 = vmatprep.subr.mxu0 0.0
    %1121 = vmatpush1.msra.mxu0 0.0
    %1122 = vmatprep.mubr.f32.mxu0 0.0
    %1123 = vmatmul.mubr.f32.gmra.mrb[0].mxu0 %v1019
    %v1124 = vpop.f32.mrb[0].mxu0
    %v1125 = vadd.f32 %v1056, %v1124
    %v1126 = vpop.f32.mrb[0].mxu0
    %1127 = vmatprep.mubr.f32.mxu0 0.0
    %1128 = vmatmul.mubr.f32.gmra.mrb[0].mxu0 %v1020
    %v1129 = vpop.f32.mrb[0].mxu0
    %v1130 = vadd.f32 %v1056, %v1129
    %v1131 = vpop.f32.mrb[0].mxu0
    %1132 = vmatprep.mubr.f32.mxu0 0.0
    %1133 = vmatmul.mubr.f32.gmra.mrb[0].mxu0 %v1021
    %v1134 = vpop.f32.mrb[0].mxu0
    %v1135 = vadd.f32 %v1056, %v1134
    %v1136 = vpop.f32.mrb[0].mxu0
    %1137 = vmatprep.mubr.f32.mxu0 0.0
    %1138 = vmatmul.mubr.f32.gmra.mrb[0].mxu0 %v1022
    %v1139 = vpop.f32.mrb[0].mxu0
    %v1140 = vadd.f32 %v1056, %v1139
    %v1141 = vpop.f32.mrb[0].mxu0
    %1142 = vmatprep.mubr.f32.mxu0 0.0
    %1143 = vmatmul.mubr.f32.gmra.mrb[0].mxu0 %v1023
    %v1144 = vpop.f32.mrb[0].mxu0
    %v1145 = vadd.f32 %v1056, %v1144
    %v1146 = vpop.f32.mrb[0].mxu0
    %1147 = vmatprep.mubr.f32.mxu0 0.0
    %1148 = vmatmul.mubr.f32.gmra.mrb[0].mxu0 %v1024
    %v1149 = vpop.f32.mrb[0].mxu0
    %v1150 = vadd.f32 %v1056, %v1149
    %v1151 = vpop.f32.mrb[0].mxu0
    %1152 = vmatprep.mubr.f32.mxu0 0.0
    %1153 = vmatmul.mubr.f32.gmra.mrb[0].mxu0 %v1025
    %v1154 = vpop.f32.mrb[0].mxu0
    %v1155 = vadd.f32 %v1056, %v1154
    %v1156 = vpop.f32.mrb[0].mxu0
    %1157 = vmatprep.mubr.f32.mxu0 0.0
    %1158 = vmatmul.mubr.f32.gmra.mrb[0].mxu0 %v1026
    %v1159 = vpop.f32.mrb[0].mxu0
    %v1160 = vadd.f32 %v1056, %v1159
    %v1161 = vpop.f32.mrb[0].mxu0
    %1162 = vmatprep.mubr.f32.mxu0 0.0
    %1163 = vmatmul.mubr.f32.gmra.mrb[0].mxu0 %v1027
    %v1164 = vpop.f32.mrb[0].mxu0
    %v1165 = vadd.f32 %v1056, %v1164
    %v1166 = vpop.f32.mrb[0].mxu0
    %1167 = vmatprep.mubr.f32.mxu0 0.0
    %1168 = vmatmul.mubr.f32.gmra.mrb[0].mxu0 %v1028
    %v1169 = vpop.f32.mrb[0].mxu0
    %v1170 = vadd.f32 %v1056, %v1169
    %v1171 = vpop.f32.mrb[0].mxu0
    %1172 = vmatprep.mubr.f32.mxu0 0.0
    %1173 = vmatmul.mubr.f32.gmra.mrb[0].mxu0 %v1029
    %v1174 = vpop.f32.mrb[0].mxu0
    %v1175 = vadd.f32 %v1056, %v1174
    %v1176 = vpop.f32.mrb[0].mxu0
    %1177 = vmatprep.mubr.f32.mxu0 0.0
    %1178 = vmatmul.mubr.f32.gmra.mrb[0].mxu0 %v1030
    %v1179 = vpop.f32.mrb[0].mxu0
    %v1180 = vadd.f32 %v1056, %v1179
    %v1181 = vpop.f32.mrb[0].mxu0
    %1182 = vmatprep.mubr.f32.mxu0 0.0
    %1183 = vmatmul.mubr.f32.gmra.mrb[0].mxu0 %v1031
    %v1184 = vpop.f32.mrb[0].mxu0
    %v1185 = vadd.f32 %v1056, %v1184
    %v1186 = vpop.f32.mrb[0].mxu0
    %1187 = vmatprep.mubr.f32.mxu0 0.0
    %1188 = vmatmul.mubr.f32.gmra.mrb[0].mxu0 %v1032
    %v1189 = vpop.f32.mrb[0].mxu0
    %v1190 = vadd.f32 %v1056, %v1189
    %v1191 = vpop.f32.mrb[0].mxu0
    %1192 = vmatprep.mubr.f32.mxu0 0.0
    %1193 = vmatmul.mubr.f32.gmra.mrb[0].mxu0 %v1033
    %v1194 = vpop.f32.mrb[0].mxu0
    %v1195 = vadd.f32 %v1056, %v1194
    %v1196 = vpop.f32.mrb[0].mxu0
    %1197 = vmatprep.mubr.f32.mxu0 0.0
    %1198 = vmatmul.mubr.f32.gmra.mrb[0].mxu0 %v1034
    %v1199 = vpop.f32.mrb[0].mxu0
    %v1200 = vadd.f32 %v1056, %v1199
    %v1201 = vpop.f32.mrb[0].mxu0
    %1202 = vdwg.mxu0
    %v1203 = vmul.f32 %v1125, 0.2
    %v1204 = vmul.f32 %v1130, 0.2
    %v1205 = vmul.f32 %v1135, 0.2
    %v1206 = vmul.f32 %v1140, 0.2
    %v1207 = vmul.f32 %v1145, 0.2
    %v1208 = vmul.f32 %v1150, 0.2
    %v1209 = vmul.f32 %v1155, 0.2
    %v1210 = vmul.f32 %v1160, 0.2
    %v1211 = vmul.f32 %v1165, 0.2
    %v1212 = vmul.f32 %v1170, 0.2
    %v1213 = vmul.f32 %v1175, 0.2
    %v1214 = vmul.f32 %v1180, 0.2
    %v1215 = vmul.f32 %v1185, 0.2
    %v1216 = vmul.f32 %v1190, 0.2
    %v1217 = vmul.f32 %v1195, 0.2
    %v1218 = vmul.f32 %v1200, 0.2
    %v1219 = vmax.f32 %v1125, %v1203
    %v1220 = vmax.f32 %v1130, %v1204
    %v1221 = vmax.f32 %v1135, %v1205
    %v1222 = vmax.f32 %v1140, %v1206
    %v1223 = vmax.f32 %v1145, %v1207
    %v1224 = vmax.f32 %v1150, %v1208
    %v1225 = vmax.f32 %v1155, %v1209
    %v1226 = vmax.f32 %v1160, %v1210
    %v1227 = vmax.f32 %v1165, %v1211
    %v1228 = vmax.f32 %v1170, %v1212
    %v1229 = vmax.f32 %v1175, %v1213
    %v1230 = vmax.f32 %v1180, %v1214
    %v1231 = vmax.f32 %v1185, %v1215
    %v1232 = vmax.f32 %v1190, %v1216
    %v1233 = vmax.f32 %v1195, %v1217
    %v1234 = vmax.f32 %v1200, %v1218
    %v1235 = vld [vmem:[%s9] sm:$0x1]
    %v1236 = vld [vmem:[#allocation2] sm:$0x1]
    %1238 = vset.pattern.permute.xlu0 0
    %1239 = vperm.xlu0 %1238, %v1236
    %v1240 = vpop.permute.xlu0 %1239
    %v1242 = vlaneseq
    %v1243 = vshrl.u32 %v1242, 7
    %v1244 = vsub.s32 0, %v1243
    %v1245 = vrot.slane %v1240, %v1244
    %1246 = vmatprep.subr.mxu0 0.0
    %1247 = vmatpush1.xpose.msra.mxu0 %v1219
    %1248 = vmatprep.subr.mxu0 0.0
    %1249 = vmatpush1.xpose.msra.mxu0 %v1220
    %1250 = vmatprep.subr.mxu0 0.0
    %1251 = vmatpush1.xpose.msra.mxu0 %v1221
    %1252 = vmatprep.subr.mxu0 0.0
    %1253 = vmatpush1.xpose.msra.mxu0 %v1222
    %1254 = vmatprep.subr.mxu0 0.0
    %1255 = vmatpush1.xpose.msra.mxu0 %v1223
    %1256 = vmatprep.subr.mxu0 0.0
    %1257 = vmatpush1.xpose.msra.mxu0 %v1224
    %1258 = vmatprep.subr.mxu0 0.0
    %1259 = vmatpush1.xpose.msra.mxu0 %v1225
    %1260 = vmatprep.subr.mxu0 0.0
    %1261 = vmatpush1.xpose.msra.mxu0 %v1226
    %1262 = vmatprep.subr.mxu0 0.0
    %1263 = vmatpush1.xpose.msra.mxu0 %v1227
    %1264 = vmatprep.subr.mxu0 0.0
    %1265 = vmatpush1.xpose.msra.mxu0 %v1228
    %1266 = vmatprep.subr.mxu0 0.0
    %1267 = vmatpush1.xpose.msra.mxu0 %v1229
    %1268 = vmatprep.subr.mxu0 0.0
    %1269 = vmatpush1.xpose.msra.mxu0 %v1230
    %1270 = vmatprep.subr.mxu0 0.0
    %1271 = vmatpush1.xpose.msra.mxu0 %v1231
    %1272 = vmatprep.subr.mxu0 0.0
    %1273 = vmatpush1.xpose.msra.mxu0 %v1232
    %1274 = vmatprep.subr.mxu0 0.0
    %1275 = vmatpush1.xpose.msra.mxu0 %v1233
    %1276 = vmatprep.subr.mxu0 0.0
    %1277 = vmatpush1.xpose.msra.mxu0 %v1234
    %1278 = vmatprep.subr.mxu0 0.0
    %1279 = vmatpush1.xpose.msra.mxu0 0.0
    %1280 = vmatprep.subr.mxu0 0.0
    %1281 = vmatpush1.xpose.msra.mxu0 0.0
    %1282 = vmatprep.subr.mxu0 0.0
    %1283 = vmatpush1.xpose.msra.mxu0 0.0
    %1284 = vmatprep.subr.mxu0 0.0
    %1285 = vmatpush1.xpose.msra.mxu0 0.0
    %1286 = vmatprep.subr.mxu0 0.0
    %1287 = vmatpush1.xpose.msra.mxu0 0.0
    %1288 = vmatprep.subr.mxu0 0.0
    %1289 = vmatpush1.xpose.msra.mxu0 0.0
    %1290 = vmatprep.subr.mxu0 0.0
    %1291 = vmatpush1.xpose.msra.mxu0 0.0
    %1292 = vmatprep.subr.mxu0 0.0
    %1293 = vmatpush1.xpose.msra.mxu0 0.0
    %1294 = vmatprep.subr.mxu0 0.0
    %1295 = vmatpush1.xpose.msra.mxu0 0.0
    %1296 = vmatprep.subr.mxu0 0.0
    %1297 = vmatpush1.xpose.msra.mxu0 0.0
    %1298 = vmatprep.subr.mxu0 0.0
    %1299 = vmatpush1.xpose.msra.mxu0 0.0
    %1300 = vmatprep.subr.mxu0 0.0
    %1301 = vmatpush1.xpose.msra.mxu0 0.0
    %1302 = vmatprep.subr.mxu0 0.0
    %1303 = vmatpush1.xpose.msra.mxu0 0.0
    %1304 = vmatprep.subr.mxu0 0.0
    %1305 = vmatpush1.xpose.msra.mxu0 0.0
    %1306 = vmatprep.subr.mxu0 0.0
    %1307 = vmatpush1.xpose.msra.mxu0 0.0
    %1308 = vmatprep.subr.mxu0 0.0
    %1309 = vmatpush1.xpose.msra.mxu0 0.0
    %1310 = vmatprep.mubr.f32.mxu0 0.0
    %1311 = vmatmul.mubr.f32.gmra.mrb[0].mxu0 %v1235
    %v1312 = vpop.f32.mrb[0].mxu0
    %v1313 = vadd.f32 %v1245, %v1312
    %v1314 = vpop.f32.mrb[0].mxu0
    %1315 = vdwg.mxu0
    %1316 = vst [vmem:[#allocation3] sm:$0x1] %v1313
    // Predicated region
    $region46: #{tpu_custom_call.1} parent=1 // pred_check
      _
    $region47: #{tpu_custom_call.1} parent=1 // pred_check_branch
      %1318 = sbr.rel (0) target = $region49
    $region48: #{tpu_custom_call.1} parent=1 // pred_region
      %s1320 = ssub.s32 16, 16
      %1321 = vsyncadd [#allocation4], %s1320
      %s1323 = sshll.u32 [#allocation3], 4
      %s1324 = int_to_ptr.vmem [resolvable:$true] %s1323
      %1326 = dma.vmem_to_hbm [thread:$0]  %s1324, 16, %s11, [#allocation4]
    $region49: #{tpu_custom_call.1} parent=1 // pred_fallthru
      _
    // Predicated region
    $region50: #{tpu_custom_call.1} parent=1 // pred_check
      _
    $region51: #{tpu_custom_call.1} parent=1 // pred_check_branch
      %1328 = sbr.rel (0) target = $region53
    $region52: #{tpu_custom_call.1} parent=1 // pred_region
      %1329 = dma.done [#allocation4], 16
    $region53: #{tpu_custom_call.1} parent=1 // pred_fallthru
      _
    %1330 = vsyncpa [#allocation4], 1

</llo_original>
